<compile_context>
chip_gen: v6e
topology: v6e:2x2x1
jax: 0.10.0
libtpu: 0.0.40
codegen_flags: <defaults>
</compile_context>

<pallas_src>
import math
import functools

import jax
import jax.numpy as jnp
from jax.experimental import pallas as pl
from jax.experimental.pallas import tpu as pltpu


def _pick_seq_tile(s, target=128):
    """Largest tile <= target that divides s (multiple of 8 when s > target)."""
    if s <= target:
        return s
    for t in range(target, 0, -8):
        if s % t == 0:
            return t
    return s  # fallback: whole sequence in one block (== full dim, still legal)


# ------------------------------------------------------------------ fused attention block


def _mha_block_kernel(q_in_ref, kv_in_ref,
                      wq_ref, bq_ref, wkv_ref, bkv_ref, wo_ref, bo_ref,
                      g_ref, b_ref, o_ref,
                      kv_scratch, head_scratch,
                      *, num_heads, scale, eps, causal, q_tile):
    """One (batch, q-tile) step: Q/KV projection + attention + out-proj + residual + LN."""
    x = q_in_ref[0]                 # [TQ, D]  query input, also the residual
    TQ, D = x.shape
    Dh = D // num_heads
    Sk = kv_scratch.shape[0]

    # K/V projection: computed once per batch element (q-tile 0), carried in a
    # VMEM scratch across the remaining q tiles of that batch element.
    @pl.when(pl.program_id(1) == 0)
    def _():
        kv_scratch[...] = (
            jnp.dot(kv_in_ref[0], wkv_ref[...], preferred_element_type=jnp.float32)
            + bkv_ref[...])

    # Q projection; fold the 1/sqrt(Dh) scale into Q (Sq*D muls, not Sq*Sk/head).
    q = (jnp.dot(x, wq_ref[...], preferred_element_type=jnp.float32)
         + bq_ref[...]) * scale
    kv = kv_scratch[...]
    k = kv[:, :D]
    v = kv[:, D:]

    if causal:
        qpos = (jax.lax.broadcasted_iota(jnp.int32, (TQ, Sk), 0)
                + pl.program_id(1) * q_tile)
        kpos = jax.lax.broadcasted_iota(jnp.int32, (TQ, Sk), 1)
        mask = jnp.where(qpos >= kpos, 0.0, -1e9).astype(jnp.float32)

    # Contract the last dims of Q and K directly (Q @ K^T without a vxpose).
    score_dims = (((1,), (1,)), ((), ()))

    # TODO(synk): switch to lax.fori_loop over heads once num_heads >~ 8 to
    # bound vreg live ranges; at H=4 full unroll is fine.
    for h in range(num_heads):
        sl = slice(h * Dh, (h + 1) * Dh)
        s = jax.lax.dot_general(q[:, sl], k[:, sl], score_dims,
                                preferred_element_type=jnp.float32)
        if causal:
            s = s + mask
        s = s - jnp.max(s, axis=-1, keepdims=True)
        p = jnp.exp(s)
        p = p * pl.reciprocal(jnp.sum(p, axis=-1, keepdims=True), approx=False)
        # Assemble each head's context at its lane slice; the out-projection
        # below is a single D-deep MXU matmul instead of H shallow ones.
        head_scratch[:, sl] = jnp.dot(p, v[:, sl],
                                      preferred_element_type=jnp.float32)

    y = (jnp.dot(head_scratch[...], wo_ref[...],
                 preferred_element_type=jnp.float32) + bo_ref[...])

    # Residual + LayerNorm fused into the epilogue (all in f32).
    r = x + y
    mu = jnp.mean(r, axis=-1, keepdims=True)
    var = jnp.mean((r - mu) * (r - mu), axis=-1, keepdims=True)
    out = (r - mu) * jax.lax.rsqrt(var + eps)
    o_ref[0] = (out * g_ref[...] + b_ref[...]).astype(o_ref.dtype)


def mha_block(q_in, kv_in, p, gamma, beta, *, num_heads, causal,
              eps=1e-5, q_tile_target=128):
    """q_in: [B, Sq, D]; kv_in: [B, Sk, D].

    Returns LayerNorm(q_in + MHA(q_in, kv_in, kv_in, causal_mask?)) : [B, Sq, D].
    """
    B, Sq, D = q_in.shape
    Sk = kv_in.shape[1]
    assert D % num_heads == 0
    scale = 1.0 / math.sqrt(D // num_heads)

    TQ = _pick_seq_tile(Sq, q_tile_target)
    nq = Sq // TQ

    kernel = functools.partial(_mha_block_kernel, num_heads=num_heads,
                               scale=scale, eps=eps, causal=causal, q_tile=TQ)

    return pl.pallas_call(
        kernel,
        out_shape=jax.ShapeDtypeStruct((B, Sq, D), q_in.dtype),
        grid=(B, nq),
        in_specs=[
            pl.BlockSpec((1, TQ, D), lambda b, q: (b, q, 0)),    # q_in / residual tile
            pl.BlockSpec((1, Sk, D), lambda b, q: (b, 0, 0)),    # kv_in (whole seq)
            pl.BlockSpec((D, D), lambda b, q: (0, 0)),           # wq
            pl.BlockSpec((1, D), lambda b, q: (0, 0)),           # bq
            pl.BlockSpec((D, 2 * D), lambda b, q: (0, 0)),       # wkv (K|V fused)
            pl.BlockSpec((1, 2 * D), lambda b, q: (0, 0)),       # bkv
            pl.BlockSpec((D, D), lambda b, q: (0, 0)),           # wo
            pl.BlockSpec((1, D), lambda b, q: (0, 0)),           # bo
            pl.BlockSpec((1, D), lambda b, q: (0, 0)),           # LN gamma
            pl.BlockSpec((1, D), lambda b, q: (0, 0)),           # LN beta
        ],
        out_specs=pl.BlockSpec((1, TQ, D), lambda b, q: (b, q, 0)),
        scratch_shapes=[
            pltpu.VMEM((Sk, 2 * D), jnp.float32),   # K|V carried across q tiles
            pltpu.VMEM((TQ, D), jnp.float32),       # per-head context assembly
        ],
        compiler_params=pltpu.CompilerParams(
            dimension_semantics=("parallel", "arbitrary")),
    )(q_in, kv_in, p["wq"], p["bq"], p["wkv"], p["bkv"], p["wo"], p["bo"],
      gamma, beta)


# ------------------------------------------------------------------ fused FFN block


def _ffn_block_kernel(x_ref, w1_ref, b1_ref, w2_ref, b2_ref, g_ref, b_ref, o_ref,
                      *, eps, f_tile):
    """One (batch, seq-tile) step: F-tiled ReLU MLP + residual + LayerNorm."""
    x = x_ref[0]                                   # [TS, D]
    F = w1_ref.shape[1]

    # F-tiled MLP: only a [TS, f_tile] panel of the hidden activation is live.
    y = jnp.zeros((x.shape[0], w2_ref.shape[1]), jnp.float32)
    for f0 in range(0, F, f_tile):
        fs = slice(f0, f0 + f_tile)
        h = (jnp.dot(x, w1_ref[:, fs], preferred_element_type=jnp.float32)
             + b1_ref[:, fs])
        h = jnp.maximum(h, 0.0)
        y = y + jnp.dot(h, w2_ref[fs, :], preferred_element_type=jnp.float32)
    y = y + b2_ref[...]

    r = x + y
    mu = jnp.mean(r, axis=-1, keepdims=True)
    var = jnp.mean((r - mu) * (r - mu), axis=-1, keepdims=True)
    out = (r - mu) * jax.lax.rsqrt(var + eps)
    o_ref[0] = (out * g_ref[...] + b_ref[...]).astype(o_ref.dtype)


def ffn_block(x, w1, b1, w2, b2, gamma, beta, *, eps=1e-5,
              s_tile_target=128, f_tile_target=512):
    """x: [B, S, D] -> LayerNorm(x + FFN(x)) : [B, S, D]."""
    B, S, D = x.shape
    F = w1.shape[1]
    TS = _pick_seq_tile(S, s_tile_target)
    ns = S // TS
    TF = F if F <= f_tile_target else f_tile_target
    assert F % TF == 0  # TODO(synk): ragged F tiles

    kernel = functools.partial(_ffn_block_kernel, eps=eps, f_tile=TF)
    return pl.pallas_call(
        kernel,
        out_shape=jax.ShapeDtypeStruct((B, S, D), x.dtype),
        grid=(B, ns),
        in_specs=[
            pl.BlockSpec((1, TS, D), lambda b, s: (b, s, 0)),
            pl.BlockSpec((D, F), lambda b, s: (0, 0)),
            pl.BlockSpec((1, F), lambda b, s: (0, 0)),
            pl.BlockSpec((F, D), lambda b, s: (0, 0)),
            pl.BlockSpec((1, D), lambda b, s: (0, 0)),
            pl.BlockSpec((1, D), lambda b, s: (0, 0)),
            pl.BlockSpec((1, D), lambda b, s: (0, 0)),
        ],
        out_specs=pl.BlockSpec((1, TS, D), lambda b, s: (b, s, 0)),
        compiler_params=pltpu.CompilerParams(
            dimension_semantics=("parallel", "parallel")),
    )(x, w1, b1, w2, b2, gamma, beta)


# ------------------------------------------------------------------ layer composition


def decoder_layer(x, enc_out, params, num_heads):
    """x: [B, St, D]; enc_out: [B, Ss, D].  Causal self-attention, unmasked cross-attention."""
    # self attention + add & norm1   (one fused pallas_call, causal mask in-kernel)
    x = mha_block(x, x, params["self_attn"], params["ln1_g"], params["ln1_b"],
                  num_heads=num_heads, causal=True)
    # encoder-decoder attention + add & norm2   (one fused pallas_call, no mask)
    x = mha_block(x, enc_out, params["cross_attn"], params["ln2_g"], params["ln2_b"],
                  num_heads=num_heads, causal=False)
    # feed forward + add & norm3   (one fused pallas_call)
    x = ffn_block(x, params["ffn_w1"], params["ffn_b1"],
                  params["ffn_w2"], params["ffn_b2"],
                  params["ln3_g"], params["ln3_b"])
    return x


# ------------------------------------------------------------------ param init


def init_params(key, d_model, d_ff):
    def lin(k, fan_in, fan_out):
        kw, kb = jax.random.split(k)
        lim = 1.0 / math.sqrt(fan_in)
        w = jax.random.uniform(kw, (fan_in, fan_out), jnp.float32, -lim, lim)
        b = jax.random.uniform(kb, (1, fan_out), jnp.float32, -lim, lim)
        return w, b

    ks = jax.random.split(key, 10)

    def mha_params(k4):
        wq, bq = lin(k4[0], d_model, d_model)
        wk, bk = lin(k4[1], d_model, d_model)
        wv, bv = lin(k4[2], d_model, d_model)
        wo, bo = lin(k4[3], d_model, d_model)
        # K and V projection fused into one [D, 2D] weight for a single matmul.
        wkv = jnp.concatenate([wk, wv], axis=1)
        bkv = jnp.concatenate([bk, bv], axis=1)
        return dict(wq=wq, bq=bq, wkv=wkv, bkv=bkv, wo=wo, bo=bo)

    ffn_w1, ffn_b1 = lin(ks[8], d_model, d_ff)
    ffn_w2, ffn_b2 = lin(ks[9], d_ff, d_model)

    return dict(
        self_attn=mha_params(ks[0:4]),
        cross_attn=mha_params(ks[4:8]),
        ffn_w1=ffn_w1, ffn_b1=ffn_b1, ffn_w2=ffn_w2, ffn_b2=ffn_b2,
        ln1_g=jnp.ones((1, d_model), jnp.float32), ln1_b=jnp.zeros((1, d_model), jnp.float32),
        ln2_g=jnp.ones((1, d_model), jnp.float32), ln2_b=jnp.zeros((1, d_model), jnp.float32),
        ln3_g=jnp.ones((1, d_model), jnp.float32), ln3_b=jnp.zeros((1, d_model), jnp.float32),
    )


# ------------------------------------------------------------------ main


if __name__ == "__main__":
    B, S_tgt, S_src = 2, 8, 8
    d_model, num_heads, d_ff, dropout = 32, 4, 64, 0.1  # dropout unused (eval mode)

    key = jax.random.PRNGKey(0)
    k_x, k_enc, k_p = jax.random.split(key, 3)

    x = jax.random.normal(k_x, (B, S_tgt, d_model), jnp.float32)
    encoder_output = jax.random.normal(k_enc, (B, S_src, d_model), jnp.float32)
    params = init_params(k_p, d_model, d_ff)

    # tgt_mask: causal (generated in-kernel); src_mask: None (no mask).
    out = decoder_layer(x, encoder_output, params, num_heads)
    out = jax.block_until_ready(out)
    assert out.shape == (B, S_tgt, d_model)
    assert bool(jnp.all(jnp.isfinite(out)))
    print("KERNEL_OK")
</pallas_src>

<mosaic_0001>
module attributes {stable_mosaic.version = 11 : i64} {
  func.func @_mha_block_kernel(%arg0: i32, %arg1: i32, %arg2: memref<1x8x32xf32, #tpu.memory_space<vmem>>, %arg3: memref<1x8x32xf32, #tpu.memory_space<vmem>>, %arg4: memref<32x32xf32, #tpu.memory_space<vmem>>, %arg5: memref<1x32xf32, #tpu.memory_space<vmem>>, %arg6: memref<32x64xf32, #tpu.memory_space<vmem>>, %arg7: memref<1x64xf32, #tpu.memory_space<vmem>>, %arg8: memref<32x32xf32, #tpu.memory_space<vmem>>, %arg9: memref<1x32xf32, #tpu.memory_space<vmem>>, %arg10: memref<1x32xf32, #tpu.memory_space<vmem>>, %arg11: memref<1x32xf32, #tpu.memory_space<vmem>>, %arg12: memref<1x8x32xf32, #tpu.memory_space<vmem>>, %arg13: memref<8x64xf32, #tpu.memory_space<vmem>>, %arg14: memref<8x32xf32, #tpu.memory_space<vmem>>) attributes {dimension_semantics = [#tpu.dimension_semantics<parallel>, #tpu.dimension_semantics<arbitrary>], iteration_bounds = array<i64: 2, 1>, scalar_prefetch = 0 : i64, scratch_operands = 2 : i64, tpu.core_type = #tpu.core_type<tc>, window_params = [{transform_indices = @transform_0, window_bounds = array<i64: 1, 8, 32>}, {transform_indices = @transform_1, window_bounds = array<i64: 1, 8, 32>}, {pipeline_mode = #tpu.pipeline_mode<synchronous>, transform_indices = @transform_2, window_bounds = array<i64: 32, 32>}, {pipeline_mode = #tpu.pipeline_mode<synchronous>, transform_indices = @transform_3, window_bounds = array<i64: 1, 32>}, {pipeline_mode = #tpu.pipeline_mode<synchronous>, transform_indices = @transform_4, window_bounds = array<i64: 32, 64>}, {pipeline_mode = #tpu.pipeline_mode<synchronous>, transform_indices = @transform_5, window_bounds = array<i64: 1, 64>}, {pipeline_mode = #tpu.pipeline_mode<synchronous>, transform_indices = @transform_6, window_bounds = array<i64: 32, 32>}, {pipeline_mode = #tpu.pipeline_mode<synchronous>, transform_indices = @transform_7, window_bounds = array<i64: 1, 32>}, {pipeline_mode = #tpu.pipeline_mode<synchronous>, transform_indices = @transform_8, window_bounds = array<i64: 1, 32>}, {pipeline_mode = #tpu.pipeline_mode<synchronous>, transform_indices = @transform_9, window_bounds = array<i64: 1, 32>}, {transform_indices = @transform_10, window_bounds = array<i64: 1, 8, 32>}]} {
    %c0 = arith.constant 0 : index
    %c0_0 = arith.constant 0 : index
    %c0_1 = arith.constant 0 : index
    %0 = vector.load %arg2[%c0, %c0_0, %c0_1] : memref<1x8x32xf32, #tpu.memory_space<vmem>>, vector<1x8x32xf32>
    %1 = vector.shape_cast %0 : vector<1x8x32xf32> to vector<8x32xf32>
    %c0_i32 = arith.constant 0 : i32
    %2 = arith.cmpi eq, %arg1, %c0_i32 : i32
    %3 = arith.extui %2 : i1 to i32
    %c0_i32_2 = arith.constant 0 : i32
    %4 = arith.cmpi ne, %3, %c0_i32_2 : i32
    scf.if %4 {
      %c0_52 = arith.constant 0 : index
      %c0_53 = arith.constant 0 : index
      %c0_54 = arith.constant 0 : index
      %128 = vector.load %arg3[%c0_52, %c0_53, %c0_54] : memref<1x8x32xf32, #tpu.memory_space<vmem>>, vector<1x8x32xf32>
      %129 = vector.shape_cast %128 : vector<1x8x32xf32> to vector<8x32xf32>
      %c0_55 = arith.constant 0 : index
      %c0_56 = arith.constant 0 : index
      %130 = vector.load %arg6[%c0_55, %c0_56] : memref<32x64xf32, #tpu.memory_space<vmem>>, vector<32x64xf32>
      %cst_57 = arith.constant dense<0.000000e+00> : vector<8x64xf32>
      %131 = tpu.matmul %129, %130, %cst_57 {dimension_numbers = #tpu.dot_dimension_numbers<[1], [0], [0], [1], [0, 0, 1, 1], [], []>} : vector<8x32xf32>, vector<32x64xf32>, vector<8x64xf32> -> vector<8x64xf32>
      %c0_58 = arith.constant 0 : index
      %c0_59 = arith.constant 0 : index
      %132 = vector.load %arg7[%c0_58, %c0_59] : memref<1x64xf32, #tpu.memory_space<vmem>>, vector<1x64xf32>
      %133 = vector.broadcast %132 : vector<1x64xf32> to vector<8x64xf32>
      %134 = arith.addf %131, %133 : vector<8x64xf32>
      %c0_60 = arith.constant 0 : index
      %c0_61 = arith.constant 0 : index
      %135 = vector.load %arg13[%c0_60, %c0_61] : memref<8x64xf32, #tpu.memory_space<vmem>>, vector<8x64xf32>
      tpu.vector_store %arg13[%c0_60, %c0_61], %134 {strides = array<i32>} : memref<8x64xf32, #tpu.memory_space<vmem>>, vector<8x64xf32>,
    } else {
    }
    %c0_3 = arith.constant 0 : index
    %c0_4 = arith.constant 0 : index
    %5 = vector.load %arg4[%c0_3, %c0_4] : memref<32x32xf32, #tpu.memory_space<vmem>>, vector<32x32xf32>
    %cst = arith.constant dense<0.000000e+00> : vector<8x32xf32>
    %6 = tpu.matmul %1, %5, %cst {dimension_numbers = #tpu.dot_dimension_numbers<[1], [0], [0], [1], [0, 0, 1, 1], [], []>} : vector<8x32xf32>, vector<32x32xf32>, vector<8x32xf32> -> vector<8x32xf32>
    %c0_5 = arith.constant 0 : index
    %c0_6 = arith.constant 0 : index
    %7 = vector.load %arg5[%c0_5, %c0_6] : memref<1x32xf32, #tpu.memory_space<vmem>>, vector<1x32xf32>
    %8 = vector.broadcast %7 : vector<1x32xf32> to vector<8x32xf32>
    %9 = arith.addf %6, %8 : vector<8x32xf32>
    %cst_7 = arith.constant 0.353553385 : f32
    %10 = vector.broadcast %cst_7 : f32 to vector<8x32xf32>
    %11 = arith.mulf %9, %10 : vector<8x32xf32>
    %c0_8 = arith.constant 0 : index
    %c0_9 = arith.constant 0 : index
    %12 = vector.load %arg13[%c0_8, %c0_9] : memref<8x64xf32, #tpu.memory_space<vmem>>, vector<8x64xf32>
    %13 = vector.extract_strided_slice %12 {offsets = [0, 0], sizes = [8, 32], strides = [1, 1]} : vector<8x64xf32> to vector<8x32xf32>
    %14 = vector.extract_strided_slice %12 {offsets = [0, 32], sizes = [8, 32], strides = [1, 1]} : vector<8x64xf32> to vector<8x32xf32>
    %15 = tpu.iota {dimensions = array<i32: 0>} : vector<8x8xi32>
    %c8_i32 = arith.constant 8 : i32
    %16 = arith.muli %arg1, %c8_i32 : i32
    %17 = vector.broadcast %16 : i32 to vector<8x8xi32>
    %18 = arith.addi %15, %17 : vector<8x8xi32>
    %19 = tpu.iota {dimensions = array<i32: 1>} : vector<8x8xi32>
    %20 = arith.cmpi sge, %18, %19 : vector<8x8xi32>
    %cst_10 = arith.constant 0.000000e+00 : f32
    %cst_11 = arith.constant -1.000000e+09 : f32
    %21 = vector.broadcast %cst_10 : f32 to vector<8x8xf32>
    %22 = vector.broadcast %cst_11 : f32 to vector<8x8xf32>
    %23 = arith.select %20, %21, %22 : vector<8x8xi1>, vector<8x8xf32>
    %24 = vector.extract_strided_slice %11 {offsets = [0, 0], sizes = [8, 8], strides = [1, 1]} : vector<8x32xf32> to vector<8x8xf32>
    %25 = vector.extract_strided_slice %13 {offsets = [0, 0], sizes = [8, 8], strides = [1, 1]} : vector<8x32xf32> to vector<8x8xf32>
    %cst_12 = arith.constant dense<0.000000e+00> : vector<8x8xf32>
    %26 = tpu.matmul %24, %25, %cst_12 {dimension_numbers = #tpu.dot_dimension_numbers<[1], [1], [0], [0], [0, 0, 1, 0], [], []>} : vector<8x8xf32>, vector<8x8xf32>, vector<8x8xf32> -> vector<8x8xf32>
    %27 = arith.addf %26, %23 : vector<8x8xf32>
    %cst_13 = arith.constant dense<0xFF800000> : vector<8xf32>
    %28 = vector.multi_reduction <maximumf>, %27, %cst_13 [1] : vector<8x8xf32> to vector<8xf32>
    %29 = vector.shape_cast %28 : vector<8xf32> to vector<8x1xf32>
    %30 = vector.broadcast %29 : vector<8x1xf32> to vector<8x8xf32>
    %31 = arith.subf %27, %30 : vector<8x8xf32>
    %32 = math.exp %31 : vector<8x8xf32>
    %cst_14 = arith.constant dense<0.000000e+00> : vector<8xf32>
    %33 = vector.multi_reduction <add>, %32, %cst_14 [1] : vector<8x8xf32> to vector<8xf32>
    %34 = vector.shape_cast %33 : vector<8xf32> to vector<8x1xf32>
    %35 = tpu.reciprocal %34 : vector<8x1xf32> -> vector<8x1xf32>
    %36 = vector.broadcast %35 : vector<8x1xf32> to vector<8x8xf32>
    %37 = arith.mulf %32, %36 : vector<8x8xf32>
    %38 = vector.extract_strided_slice %14 {offsets = [0, 0], sizes = [8, 8], strides = [1, 1]} : vector<8x32xf32> to vector<8x8xf32>
    %cst_15 = arith.constant dense<0.000000e+00> : vector<8x8xf32>
    %39 = tpu.matmul %37, %38, %cst_15 {dimension_numbers = #tpu.dot_dimension_numbers<[1], [0], [0], [1], [0, 0, 1, 1], [], []>} : vector<8x8xf32>, vector<8x8xf32>, vector<8x8xf32> -> vector<8x8xf32>
    %c0_16 = arith.constant 0 : index
    %c0_17 = arith.constant 0 : index
    %40 = vector.load %arg14[%c0_16, %c0_17] : memref<8x32xf32, #tpu.memory_space<vmem>>, vector<8x8xf32>
    tpu.vector_store %arg14[%c0_16, %c0_17], %39 {strides = array<i32>} : memref<8x32xf32, #tpu.memory_space<vmem>>, vector<8x8xf32>,
    %41 = vector.extract_strided_slice %11 {offsets = [0, 8], sizes = [8, 8], strides = [1, 1]} : vector<8x32xf32> to vector<8x8xf32>
    %42 = vector.extract_strided_slice %13 {offsets = [0, 8], sizes = [8, 8], strides = [1, 1]} : vector<8x32xf32> to vector<8x8xf32>
    %cst_18 = arith.constant dense<0.000000e+00> : vector<8x8xf32>
    %43 = tpu.matmul %41, %42, %cst_18 {dimension_numbers = #tpu.dot_dimension_numbers<[1], [1], [0], [0], [0, 0, 1, 0], [], []>} : vector<8x8xf32>, vector<8x8xf32>, vector<8x8xf32> -> vector<8x8xf32>
    %44 = arith.addf %43, %23 : vector<8x8xf32>
    %cst_19 = arith.constant dense<0xFF800000> : vector<8xf32>
    %45 = vector.multi_reduction <maximumf>, %44, %cst_19 [1] : vector<8x8xf32> to vector<8xf32>
    %46 = vector.shape_cast %45 : vector<8xf32> to vector<8x1xf32>
    %47 = vector.broadcast %46 : vector<8x1xf32> to vector<8x8xf32>
    %48 = arith.subf %44, %47 : vector<8x8xf32>
    %49 = math.exp %48 : vector<8x8xf32>
    %cst_20 = arith.constant dense<0.000000e+00> : vector<8xf32>
    %50 = vector.multi_reduction <add>, %49, %cst_20 [1] : vector<8x8xf32> to vector<8xf32>
    %51 = vector.shape_cast %50 : vector<8xf32> to vector<8x1xf32>
    %52 = tpu.reciprocal %51 : vector<8x1xf32> -> vector<8x1xf32>
    %53 = vector.broadcast %52 : vector<8x1xf32> to vector<8x8xf32>
    %54 = arith.mulf %49, %53 : vector<8x8xf32>
    %55 = vector.extract_strided_slice %14 {offsets = [0, 8], sizes = [8, 8], strides = [1, 1]} : vector<8x32xf32> to vector<8x8xf32>
    %cst_21 = arith.constant dense<0.000000e+00> : vector<8x8xf32>
    %56 = tpu.matmul %54, %55, %cst_21 {dimension_numbers = #tpu.dot_dimension_numbers<[1], [0], [0], [1], [0, 0, 1, 1], [], []>} : vector<8x8xf32>, vector<8x8xf32>, vector<8x8xf32> -> vector<8x8xf32>
    %c0_22 = arith.constant 0 : index
    %c8 = arith.constant 8 : index
    %57 = vector.load %arg14[%c0_22, %c8] : memref<8x32xf32, #tpu.memory_space<vmem>>, vector<8x8xf32>
    tpu.vector_store %arg14[%c0_22, %c8], %56 {strides = array<i32>} : memref<8x32xf32, #tpu.memory_space<vmem>>, vector<8x8xf32>,
    %58 = vector.extract_strided_slice %11 {offsets = [0, 16], sizes = [8, 8], strides = [1, 1]} : vector<8x32xf32> to vector<8x8xf32>
    %59 = vector.extract_strided_slice %13 {offsets = [0, 16], sizes = [8, 8], strides = [1, 1]} : vector<8x32xf32> to vector<8x8xf32>
    %cst_23 = arith.constant dense<0.000000e+00> : vector<8x8xf32>
    %60 = tpu.matmul %58, %59, %cst_23 {dimension_numbers = #tpu.dot_dimension_numbers<[1], [1], [0], [0], [0, 0, 1, 0], [], []>} : vector<8x8xf32>, vector<8x8xf32>, vector<8x8xf32> -> vector<8x8xf32>
    %61 = arith.addf %60, %23 : vector<8x8xf32>
    %cst_24 = arith.constant dense<0xFF800000> : vector<8xf32>
    %62 = vector.multi_reduction <maximumf>, %61, %cst_24 [1] : vector<8x8xf32> to vector<8xf32>
    %63 = vector.shape_cast %62 : vector<8xf32> to vector<8x1xf32>
    %64 = vector.broadcast %63 : vector<8x1xf32> to vector<8x8xf32>
    %65 = arith.subf %61, %64 : vector<8x8xf32>
    %66 = math.exp %65 : vector<8x8xf32>
    %cst_25 = arith.constant dense<0.000000e+00> : vector<8xf32>
    %67 = vector.multi_reduction <add>, %66, %cst_25 [1] : vector<8x8xf32> to vector<8xf32>
    %68 = vector.shape_cast %67 : vector<8xf32> to vector<8x1xf32>
    %69 = tpu.reciprocal %68 : vector<8x1xf32> -> vector<8x1xf32>
    %70 = vector.broadcast %69 : vector<8x1xf32> to vector<8x8xf32>
    %71 = arith.mulf %66, %70 : vector<8x8xf32>
    %72 = vector.extract_strided_slice %14 {offsets = [0, 16], sizes = [8, 8], strides = [1, 1]} : vector<8x32xf32> to vector<8x8xf32>
    %cst_26 = arith.constant dense<0.000000e+00> : vector<8x8xf32>
    %73 = tpu.matmul %71, %72, %cst_26 {dimension_numbers = #tpu.dot_dimension_numbers<[1], [0], [0], [1], [0, 0, 1, 1], [], []>} : vector<8x8xf32>, vector<8x8xf32>, vector<8x8xf32> -> vector<8x8xf32>
    %c0_27 = arith.constant 0 : index
    %c16 = arith.constant 16 : index
    %74 = vector.load %arg14[%c0_27, %c16] : memref<8x32xf32, #tpu.memory_space<vmem>>, vector<8x8xf32>
    tpu.vector_store %arg14[%c0_27, %c16], %73 {strides = array<i32>} : memref<8x32xf32, #tpu.memory_space<vmem>>, vector<8x8xf32>,
    %75 = vector.extract_strided_slice %11 {offsets = [0, 24], sizes = [8, 8], strides = [1, 1]} : vector<8x32xf32> to vector<8x8xf32>
    %76 = vector.extract_strided_slice %13 {offsets = [0, 24], sizes = [8, 8], strides = [1, 1]} : vector<8x32xf32> to vector<8x8xf32>
    %cst_28 = arith.constant dense<0.000000e+00> : vector<8x8xf32>
    %77 = tpu.matmul %75, %76, %cst_28 {dimension_numbers = #tpu.dot_dimension_numbers<[1], [1], [0], [0], [0, 0, 1, 0], [], []>} : vector<8x8xf32>, vector<8x8xf32>, vector<8x8xf32> -> vector<8x8xf32>
    %78 = arith.addf %77, %23 : vector<8x8xf32>
    %cst_29 = arith.constant dense<0xFF800000> : vector<8xf32>
    %79 = vector.multi_reduction <maximumf>, %78, %cst_29 [1] : vector<8x8xf32> to vector<8xf32>
    %80 = vector.shape_cast %79 : vector<8xf32> to vector<8x1xf32>
    %81 = vector.broadcast %80 : vector<8x1xf32> to vector<8x8xf32>
    %82 = arith.subf %78, %81 : vector<8x8xf32>
    %83 = math.exp %82 : vector<8x8xf32>
    %cst_30 = arith.constant dense<0.000000e+00> : vector<8xf32>
    %84 = vector.multi_reduction <add>, %83, %cst_30 [1] : vector<8x8xf32> to vector<8xf32>
    %85 = vector.shape_cast %84 : vector<8xf32> to vector<8x1xf32>
    %86 = tpu.reciprocal %85 : vector<8x1xf32> -> vector<8x1xf32>
    %87 = vector.broadcast %86 : vector<8x1xf32> to vector<8x8xf32>
    %88 = arith.mulf %83, %87 : vector<8x8xf32>
    %89 = vector.extract_strided_slice %14 {offsets = [0, 24], sizes = [8, 8], strides = [1, 1]} : vector<8x32xf32> to vector<8x8xf32>
    %cst_31 = arith.constant dense<0.000000e+00> : vector<8x8xf32>
    %90 = tpu.matmul %88, %89, %cst_31 {dimension_numbers = #tpu.dot_dimension_numbers<[1], [0], [0], [1], [0, 0, 1, 1], [], []>} : vector<8x8xf32>, vector<8x8xf32>, vector<8x8xf32> -> vector<8x8xf32>
    %c0_32 = arith.constant 0 : index
    %c24 = arith.constant 24 : index
    %91 = vector.load %arg14[%c0_32, %c24] : memref<8x32xf32, #tpu.memory_space<vmem>>, vector<8x8xf32>
    tpu.vector_store %arg14[%c0_32, %c24], %90 {strides = array<i32>} : memref<8x32xf32, #tpu.memory_space<vmem>>, vector<8x8xf32>,
    %c0_33 = arith.constant 0 : index
    %c0_34 = arith.constant 0 : index
    %92 = vector.load %arg14[%c0_33, %c0_34] : memref<8x32xf32, #tpu.memory_space<vmem>>, vector<8x32xf32>
    %c0_35 = arith.constant 0 : index
    %c0_36 = arith.constant 0 : index
    %93 = vector.load %arg8[%c0_35, %c0_36] : memref<32x32xf32, #tpu.memory_space<vmem>>, vector<32x32xf32>
    %cst_37 = arith.constant dense<0.000000e+00> : vector<8x32xf32>
    %94 = tpu.matmul %92, %93, %cst_37 {dimension_numbers = #tpu.dot_dimension_numbers<[1], [0], [0], [1], [0, 0, 1, 1], [], []>} : vector<8x32xf32>, vector<32x32xf32>, vector<8x32xf32> -> vector<8x32xf32>
    %c0_38 = arith.constant 0 : index
    %c0_39 = arith.constant 0 : index
    %95 = vector.load %arg9[%c0_38, %c0_39] : memref<1x32xf32, #tpu.memory_space<vmem>>, vector<1x32xf32>
    %96 = vector.broadcast %95 : vector<1x32xf32> to vector<8x32xf32>
    %97 = arith.addf %94, %96 : vector<8x32xf32>
    %98 = arith.addf %1, %97 : vector<8x32xf32>
    %cst_40 = arith.constant dense<0.000000e+00> : vector<8xf32>
    %99 = vector.multi_reduction <add>, %98, %cst_40 [1] : vector<8x32xf32> to vector<8xf32>
    %100 = vector.shape_cast %99 : vector<8xf32> to vector<8x1xf32>
    %cst_41 = arith.constant 3.200000e+01 : f32
    %101 = vector.broadcast %cst_41 : f32 to vector<8x1xf32>
    %102 = arith.divf %100, %101 : vector<8x1xf32>
    %103 = vector.broadcast %102 : vector<8x1xf32> to vector<8x32xf32>
    %104 = arith.subf %98, %103 : vector<8x32xf32>
    %105 = vector.broadcast %102 : vector<8x1xf32> to vector<8x32xf32>
    %106 = arith.subf %98, %105 : vector<8x32xf32>
    %107 = arith.mulf %104, %106 : vector<8x32xf32>
    %cst_42 = arith.constant dense<0.000000e+00> : vector<8xf32>
    %108 = vector.multi_reduction <add>, %107, %cst_42 [1] : vector<8x32xf32> to vector<8xf32>
    %109 = vector.shape_cast %108 : vector<8xf32> to vector<8x1xf32>
    %cst_43 = arith.constant 3.200000e+01 : f32
    %110 = vector.broadcast %cst_43 : f32 to vector<8x1xf32>
    %111 = arith.divf %109, %110 : vector<8x1xf32>
    %112 = vector.broadcast %102 : vector<8x1xf32> to vector<8x32xf32>
    %113 = arith.subf %98, %112 : vector<8x32xf32>
    %cst_44 = arith.constant 9.99999974E-6 : f32
    %114 = vector.broadcast %cst_44 : f32 to vector<8x1xf32>
    %115 = arith.addf %111, %114 : vector<8x1xf32>
    %116 = math.rsqrt %115 : vector<8x1xf32>
    %117 = vector.broadcast %116 : vector<8x1xf32> to vector<8x32xf32>
    %118 = arith.mulf %113, %117 : vector<8x32xf32>
    %c0_45 = arith.constant 0 : index
    %c0_46 = arith.constant 0 : index
    %119 = vector.load %arg10[%c0_45, %c0_46] : memref<1x32xf32, #tpu.memory_space<vmem>>, vector<1x32xf32>
    %120 = vector.broadcast %119 : vector<1x32xf32> to vector<8x32xf32>
    %121 = arith.mulf %118, %120 : vector<8x32xf32>
    %c0_47 = arith.constant 0 : index
    %c0_48 = arith.constant 0 : index
    %122 = vector.load %arg11[%c0_47, %c0_48] : memref<1x32xf32, #tpu.memory_space<vmem>>, vector<1x32xf32>
    %123 = vector.broadcast %122 : vector<1x32xf32> to vector<8x32xf32>
    %124 = arith.addf %121, %123 : vector<8x32xf32>
    %c0_49 = arith.constant 0 : index
    %c0_50 = arith.constant 0 : index
    %c0_51 = arith.constant 0 : index
    %125 = vector.load %arg12[%c0_49, %c0_50, %c0_51] : memref<1x8x32xf32, #tpu.memory_space<vmem>>, vector<1x8x32xf32>
    %126 = vector.shape_cast %125 : vector<1x8x32xf32> to vector<8x32xf32>
    %127 = vector.shape_cast %124 : vector<8x32xf32> to vector<1x8x32xf32>
    tpu.vector_store %arg12[%c0_49, %c0_50, %c0_51], %127 {strides = array<i32>} : memref<1x8x32xf32, #tpu.memory_space<vmem>>, vector<1x8x32xf32>,
    return
  }
  func.func @transform_0(%arg0: i32, %arg1: i32) -> (i32, i32, i32) {
    %c0_i32 = arith.constant 0 : i32
    %c0_i32_0 = arith.constant 0 : i32
    return %arg0, %arg1, %c0_i32 : i32, i32, i32
  }
  func.func @transform_1(%arg0: i32, %arg1: i32) -> (i32, i32, i32) {
    %c0_i32 = arith.constant 0 : i32
    %c0_i32_0 = arith.constant 0 : i32
    %c0_i32_1 = arith.constant 0 : i32
    return %arg0, %c0_i32, %c0_i32_0 : i32, i32, i32
  }
  func.func @transform_2(%arg0: i32, %arg1: i32) -> (i32, i32) {
    %c0_i32 = arith.constant 0 : i32
    %c0_i32_0 = arith.constant 0 : i32
    %c0_i32_1 = arith.constant 0 : i32
    return %c0_i32, %c0_i32_0 : i32, i32
  }
  func.func @transform_3(%arg0: i32, %arg1: i32) -> (i32, i32) {
    %c0_i32 = arith.constant 0 : i32
    %c0_i32_0 = arith.constant 0 : i32
    %c0_i32_1 = arith.constant 0 : i32
    return %c0_i32, %c0_i32_0 : i32, i32
  }
  func.func @transform_4(%arg0: i32, %arg1: i32) -> (i32, i32) {
    %c0_i32 = arith.constant 0 : i32
    %c0_i32_0 = arith.constant 0 : i32
    %c0_i32_1 = arith.constant 0 : i32
    return %c0_i32, %c0_i32_0 : i32, i32
  }
  func.func @transform_5(%arg0: i32, %arg1: i32) -> (i32, i32) {
    %c0_i32 = arith.constant 0 : i32
    %c0_i32_0 = arith.constant 0 : i32
    %c0_i32_1 = arith.constant 0 : i32
    return %c0_i32, %c0_i32_0 : i32, i32
  }
  func.func @transform_6(%arg0: i32, %arg1: i32) -> (i32, i32) {
    %c0_i32 = arith.constant 0 : i32
    %c0_i32_0 = arith.constant 0 : i32
    %c0_i32_1 = arith.constant 0 : i32
    return %c0_i32, %c0_i32_0 : i32, i32
  }
  func.func @transform_7(%arg0: i32, %arg1: i32) -> (i32, i32) {
    %c0_i32 = arith.constant 0 : i32
    %c0_i32_0 = arith.constant 0 : i32
    %c0_i32_1 = arith.constant 0 : i32
    return %c0_i32, %c0_i32_0 : i32, i32
  }
  func.func @transform_8(%arg0: i32, %arg1: i32) -> (i32, i32) {
    %c0_i32 = arith.constant 0 : i32
    %c0_i32_0 = arith.constant 0 : i32
    %c0_i32_1 = arith.constant 0 : i32
    return %c0_i32, %c0_i32_0 : i32, i32
  }
  func.func @transform_9(%arg0: i32, %arg1: i32) -> (i32, i32) {
    %c0_i32 = arith.constant 0 : i32
    %c0_i32_0 = arith.constant 0 : i32
    %c0_i32_1 = arith.constant 0 : i32
    return %c0_i32, %c0_i32_0 : i32, i32
  }
  func.func @transform_10(%arg0: i32, %arg1: i32) -> (i32, i32, i32) {
    %c0_i32 = arith.constant 0 : i32
    %c0_i32_0 = arith.constant 0 : i32
    return %arg0, %arg1, %c0_i32 : i32, i32, i32
  }
}

</mosaic_0001>

<llo_original>
// kernel: tpu_custom_call.1
$region0: #{tpu_custom_call.1}
  #allocation0 [shape = 'u32[]', space=smem, size = 0x4, offset = 0x4, fixed_abs, tag = 'smem constant byte address 0x4 - core index']
  #allocation1 [shape = 'u32[144,128]{1,0:T(1,128)}', space=vmem, size = 0x12000, scoped, tag = 'internal scratch']
  #allocation2 [shape = 'f32[8,64]{1,0:T(8,128)}', space=vmem, size = 0x1000, scoped, tag = 'scratch operand']
  #allocation3 [shape = 'f32[8,32]{1,0:T(8,128)}', space=vmem, size = 0x1000, scoped, tag = 'scratch operand']
  %s0 = inlined_call_operand.hbm [shape: f32[2,8,32], index: 0, kind: input, shape index: {}]
  %s1 = inlined_call_operand.hbm [shape: f32[2,8,32], index: 1, kind: input, shape index: {}]
  %s2 = inlined_call_operand.hbm [shape: f32[32,32], index: 2, kind: input, shape index: {}]
  %s3 = inlined_call_operand.vmem [shape: f32[1,32], index: 3, kind: input, shape index: {}]
  %s4 = inlined_call_operand.hbm [shape: f32[32,64], index: 4, kind: input, shape index: {}]
  %s5 = inlined_call_operand.vmem [shape: f32[1,64], index: 5, kind: input, shape index: {}]
  %s6 = inlined_call_operand.hbm [shape: f32[32,32], index: 6, kind: input, shape index: {}]
  %s7 = inlined_call_operand.vmem [shape: f32[1,32], index: 7, kind: input, shape index: {}]
  %s8 = inlined_call_operand.vmem [shape: f32[1,32], index: 8, kind: input, shape index: {}]
  %s9 = inlined_call_operand.vmem [shape: f32[1,32], index: 9, kind: input, shape index: {}]
  %s10 = inlined_call_operand.hbm [shape: f32[2,8,32], index: 10, kind: output, shape index: {}]
  %s11 = sld [smem:[#allocation0]]
  $region97: #{tpu_custom_call.1} parent=0
    _
  %s13 = ssub.s32 1, %s11
  %s14 = scalar_select 0, %s13, %s11
  $region1: #{tpu_custom_call.1} parent=0
    #allocation4 [shape = 'u8[8192]{0}', space=vmem, size = 0x2000, scoped, tag = 'input window, operand 0']
    #allocation5 [shape = 's32[2]{0}', space=sflag, size = 0x8, scoped, tag = 'scoped memory for tpu_custom_call.1']
    #allocation6 [shape = 's32[2]{0}', space=sflag, size = 0x8, scoped, tag = 'scoped memory for tpu_custom_call.1']
    #allocation7 [shape = 'u8[8192]{0}', space=vmem, size = 0x2000, scoped, tag = 'input window, operand 1']
    #allocation8 [shape = 's32[2]{0}', space=sflag, size = 0x8, scoped, tag = 'scoped memory for tpu_custom_call.1']
    #allocation9 [shape = 'u8[16384]{0}', space=vmem, size = 0x4000, scoped, tag = 'input window, operand 2, single buffered']
    #allocation10 [shape = 'u8[16384]{0}', space=vmem, size = 0x4000, scoped, tag = 'input window, operand 4, single buffered']
    #allocation11 [shape = 's32[1]{0}', space=sflag, size = 0x4, scoped, tag = 'scoped memory for tpu_custom_call.1']
    #allocation12 [shape = 'u8[16384]{0}', space=vmem, size = 0x4000, scoped, tag = 'input window, operand 6, single buffered']
    #allocation13 [shape = 'u8[8192]{0}', space=vmem, size = 0x2000, scoped, tag = 'output window, operand 0']
    %15 = vsyncpa [#allocation5], 0
    %s16 = scalar_lea.sflag [#allocation5], 1
    %17 = vsyncpa %s16, 0
    %18 = vsyncpa [#allocation8], 0
    %s19 = scalar_lea.sflag [#allocation8], 1
    %20 = vsyncpa %s19, 0
    %21 = vsyncpa [#allocation11], 0
    %22 = vsyncpa [#allocation6], 0
    %s23 = scalar_lea.sflag [#allocation6], 1
    %24 = vsyncpa %s23, 0
    loop: start=0, step=1, limit=4
    $region2: #{tpu_custom_call.1} parent=1 // loop_pre_header
      _
    $region3: #{tpu_custom_call.1} parent=1 // loop_header
      %s26 = sphi 0, %s30
      %p27 = scmp.ge.s32.totalorder %s26, 4
      %s33 = sphi 0, %s45
      %s34 = sphi 0, %s41
      %s35 = sphi 0, %s33
      %s36 = sphi 0, %s34
      %s37 = sphi 0, %s35
      %s38 = sphi 0, %s36
      %s50 = sphi 0, %s52
      %s53 = sphi 0, %s50
      %s54 = sphi 0, %s53
      %s70 = sphi 0, %s54
      %s76 = sphi 0, %s78
      %s79 = sphi 0, %s76
      %s80 = sphi 0, %s79
      %s96 = sphi 0, %s80
      %s100 = sphi 0, %s100
      %s102 = sphi 0, %s100
      %s103 = sphi 0, %s102
      %s117 = sphi 0, %s103
      %s121 = sphi 0, %s121
      %s123 = sphi 0, %s121
      %s124 = sphi 0, %s123
      %s138 = sphi 0, %s124
      %s142 = sphi 0, %s142
      %s144 = sphi 0, %s142
      %s145 = sphi 0, %s144
      %s159 = sphi 0, %s145
      %s163 = sphi 0, %s163
      %s165 = sphi 0, %s163
      %s166 = sphi 0, %s165
      %s180 = sphi 0, %s166
      %s184 = sphi 0, %s184
      %s186 = sphi 0, %s184
      %s187 = sphi 0, %s186
      %s201 = sphi 0, %s187
      %s205 = sphi 0, %s205
      %s207 = sphi 0, %s205
      %s208 = sphi 0, %s207
      %s222 = sphi 0, %s208
      %s226 = sphi 0, %s226
      %s228 = sphi 0, %s226
      %s229 = sphi 0, %s228
      %s243 = sphi 0, %s229
      %s247 = sphi 0, %s247
      %s249 = sphi 0, %s247
      %s250 = sphi 0, %s249
      %s264 = sphi 0, %s250
      %s272 = sphi 0, %s274
      %s275 = sphi 0, %s272
      %s276 = sphi 0, %s275
      %s292 = sphi 0, %s276
    $region4: #{tpu_custom_call.1} parent=1 // loop_header_branch
      %29 = sbr.rel (%p27) target = $region8
    $region5: #{tpu_custom_call.1} parent=1 // loop_body
      %s31 = ssub.s32 %s26, 1
      %s32 = ssub.s32 %s26, 2
      %s39 = sadd.s32 1, %s34
      %p40 = scmp.ge.s32.totalorder %s39, 1
      %s41 = scalar_select %p40, 0, %s39
      %s42 = sadd.s32 1, %s33
      %s43 = scalar_select %p40, %s42, %s33
      %p44 = scmp.ge.s32.totalorder %s43, 2
      %s45 = scalar_select %p44, 0, %s43
      %s46 = ssub.s32 %s33, %s45
      %s47 = ssub.s32 %s34, %s41
      %s48 = sor.u32 %s46, %s47
      %p49 = scmp.eq.s32.totalorder %s48, 0
      %s51 = sadd.s32 %s50, 1
      %s52 = scalar_select %p49, %s50, %s51
      %p55 = pneg %p49
      %p56 = scmp.eq.s32.totalorder %s26, 1
      %p57 = por %p55, %p56
      %p58 = scmp.ne.s32.totalorder %s50, %s53
      %p59 = scmp.eq.s32.totalorder %s26, 0
      %p60 = por %p58, %p59
      %p61 = scmp.ne.s32.totalorder %s50, %s53
      %p62 = scmp.eq.s32.totalorder %s31, 1
      %p63 = por %p61, %p62
      %p64 = scmp.ne.s32.totalorder %s53, %s54
      %p65 = scmp.eq.s32.totalorder %s31, 0
      %p66 = por %p64, %p65
      %p67 = scmp.ne.s32.totalorder %s53, %s54
      %p68 = scmp.eq.s32.totalorder %s32, 1
      %p69 = por %p67, %p68
      %p71 = scmp.ne.s32.totalorder %s54, %s70
      %p72 = scmp.eq.s32.totalorder %s32, 0
      %p73 = por %p71, %p72
      %s74 = ssub.s32 %s33, %s45
      %p75 = scmp.eq.s32.totalorder %s74, 0
      %s77 = sadd.s32 %s76, 1
      %s78 = scalar_select %p75, %s76, %s77
      %p81 = pneg %p75
      %p82 = scmp.eq.s32.totalorder %s26, 1
      %p83 = por %p81, %p82
      %p84 = scmp.ne.s32.totalorder %s76, %s79
      %p85 = scmp.eq.s32.totalorder %s26, 0
      %p86 = por %p84, %p85
      %p87 = scmp.ne.s32.totalorder %s76, %s79
      %p88 = scmp.eq.s32.totalorder %s31, 1
      %p89 = por %p87, %p88
      %p90 = scmp.ne.s32.totalorder %s79, %s80
      %p91 = scmp.eq.s32.totalorder %s31, 0
      %p92 = por %p90, %p91
      %p93 = scmp.ne.s32.totalorder %s79, %s80
      %p94 = scmp.eq.s32.totalorder %s32, 1
      %p95 = por %p93, %p94
      %p97 = scmp.ne.s32.totalorder %s80, %s96
      %p98 = scmp.eq.s32.totalorder %s32, 0
      %p99 = por %p97, %p98
      %s101 = sadd.s32 %s100, 1
      %p104 = scmp.eq.s32.totalorder %s26, 1
      %p105 = scmp.ne.s32.totalorder %s100, %s102
      %p106 = scmp.eq.s32.totalorder %s26, 0
      %p107 = por %p105, %p106
      %p108 = scmp.ne.s32.totalorder %s100, %s102
      %p109 = scmp.eq.s32.totalorder %s31, 1
      %p110 = por %p108, %p109
      %p111 = scmp.ne.s32.totalorder %s102, %s103
      %p112 = scmp.eq.s32.totalorder %s31, 0
      %p113 = por %p111, %p112
      %p114 = scmp.ne.s32.totalorder %s102, %s103
      %p115 = scmp.eq.s32.totalorder %s32, 1
      %p116 = por %p114, %p115
      %p118 = scmp.ne.s32.totalorder %s103, %s117
      %p119 = scmp.eq.s32.totalorder %s32, 0
      %p120 = por %p118, %p119
      %s122 = sadd.s32 %s121, 1
      %p125 = scmp.eq.s32.totalorder %s26, 1
      %p126 = scmp.ne.s32.totalorder %s121, %s123
      %p127 = scmp.eq.s32.totalorder %s26, 0
      %p128 = por %p126, %p127
      %p129 = scmp.ne.s32.totalorder %s121, %s123
      %p130 = scmp.eq.s32.totalorder %s31, 1
      %p131 = por %p129, %p130
      %p132 = scmp.ne.s32.totalorder %s123, %s124
      %p133 = scmp.eq.s32.totalorder %s31, 0
      %p134 = por %p132, %p133
      %p135 = scmp.ne.s32.totalorder %s123, %s124
      %p136 = scmp.eq.s32.totalorder %s32, 1
      %p137 = por %p135, %p136
      %p139 = scmp.ne.s32.totalorder %s124, %s138
      %p140 = scmp.eq.s32.totalorder %s32, 0
      %p141 = por %p139, %p140
      %s143 = sadd.s32 %s142, 1
      %p146 = scmp.eq.s32.totalorder %s26, 1
      %p147 = scmp.ne.s32.totalorder %s142, %s144
      %p148 = scmp.eq.s32.totalorder %s26, 0
      %p149 = por %p147, %p148
      %p150 = scmp.ne.s32.totalorder %s142, %s144
      %p151 = scmp.eq.s32.totalorder %s31, 1
      %p152 = por %p150, %p151
      %p153 = scmp.ne.s32.totalorder %s144, %s145
      %p154 = scmp.eq.s32.totalorder %s31, 0
      %p155 = por %p153, %p154
      %p156 = scmp.ne.s32.totalorder %s144, %s145
      %p157 = scmp.eq.s32.totalorder %s32, 1
      %p158 = por %p156, %p157
      %p160 = scmp.ne.s32.totalorder %s145, %s159
      %p161 = scmp.eq.s32.totalorder %s32, 0
      %p162 = por %p160, %p161
      %s164 = sadd.s32 %s163, 1
      %p167 = scmp.eq.s32.totalorder %s26, 1
      %p168 = scmp.ne.s32.totalorder %s163, %s165
      %p169 = scmp.eq.s32.totalorder %s26, 0
      %p170 = por %p168, %p169
      %p171 = scmp.ne.s32.totalorder %s163, %s165
      %p172 = scmp.eq.s32.totalorder %s31, 1
      %p173 = por %p171, %p172
      %p174 = scmp.ne.s32.totalorder %s165, %s166
      %p175 = scmp.eq.s32.totalorder %s31, 0
      %p176 = por %p174, %p175
      %p177 = scmp.ne.s32.totalorder %s165, %s166
      %p178 = scmp.eq.s32.totalorder %s32, 1
      %p179 = por %p177, %p178
      %p181 = scmp.ne.s32.totalorder %s166, %s180
      %p182 = scmp.eq.s32.totalorder %s32, 0
      %p183 = por %p181, %p182
      %s185 = sadd.s32 %s184, 1
      %p188 = scmp.eq.s32.totalorder %s26, 1
      %p189 = scmp.ne.s32.totalorder %s184, %s186
      %p190 = scmp.eq.s32.totalorder %s26, 0
      %p191 = por %p189, %p190
      %p192 = scmp.ne.s32.totalorder %s184, %s186
      %p193 = scmp.eq.s32.totalorder %s31, 1
      %p194 = por %p192, %p193
      %p195 = scmp.ne.s32.totalorder %s186, %s187
      %p196 = scmp.eq.s32.totalorder %s31, 0
      %p197 = por %p195, %p196
      %p198 = scmp.ne.s32.totalorder %s186, %s187
      %p199 = scmp.eq.s32.totalorder %s32, 1
      %p200 = por %p198, %p199
      %p202 = scmp.ne.s32.totalorder %s187, %s201
      %p203 = scmp.eq.s32.totalorder %s32, 0
      %p204 = por %p202, %p203
      %s206 = sadd.s32 %s205, 1
      %p209 = scmp.eq.s32.totalorder %s26, 1
      %p210 = scmp.ne.s32.totalorder %s205, %s207
      %p211 = scmp.eq.s32.totalorder %s26, 0
      %p212 = por %p210, %p211
      %p213 = scmp.ne.s32.totalorder %s205, %s207
      %p214 = scmp.eq.s32.totalorder %s31, 1
      %p215 = por %p213, %p214
      %p216 = scmp.ne.s32.totalorder %s207, %s208
      %p217 = scmp.eq.s32.totalorder %s31, 0
      %p218 = por %p216, %p217
      %p219 = scmp.ne.s32.totalorder %s207, %s208
      %p220 = scmp.eq.s32.totalorder %s32, 1
      %p221 = por %p219, %p220
      %p223 = scmp.ne.s32.totalorder %s208, %s222
      %p224 = scmp.eq.s32.totalorder %s32, 0
      %p225 = por %p223, %p224
      %s227 = sadd.s32 %s226, 1
      %p230 = scmp.eq.s32.totalorder %s26, 1
      %p231 = scmp.ne.s32.totalorder %s226, %s228
      %p232 = scmp.eq.s32.totalorder %s26, 0
      %p233 = por %p231, %p232
      %p234 = scmp.ne.s32.totalorder %s226, %s228
      %p235 = scmp.eq.s32.totalorder %s31, 1
      %p236 = por %p234, %p235
      %p237 = scmp.ne.s32.totalorder %s228, %s229
      %p238 = scmp.eq.s32.totalorder %s31, 0
      %p239 = por %p237, %p238
      %p240 = scmp.ne.s32.totalorder %s228, %s229
      %p241 = scmp.eq.s32.totalorder %s32, 1
      %p242 = por %p240, %p241
      %p244 = scmp.ne.s32.totalorder %s229, %s243
      %p245 = scmp.eq.s32.totalorder %s32, 0
      %p246 = por %p244, %p245
      %s248 = sadd.s32 %s247, 1
      %p251 = scmp.eq.s32.totalorder %s26, 1
      %p252 = scmp.ne.s32.totalorder %s247, %s249
      %p253 = scmp.eq.s32.totalorder %s26, 0
      %p254 = por %p252, %p253
      %p255 = scmp.ne.s32.totalorder %s247, %s249
      %p256 = scmp.eq.s32.totalorder %s31, 1
      %p257 = por %p255, %p256
      %p258 = scmp.ne.s32.totalorder %s249, %s250
      %p259 = scmp.eq.s32.totalorder %s31, 0
      %p260 = por %p258, %p259
      %p261 = scmp.ne.s32.totalorder %s249, %s250
      %p262 = scmp.eq.s32.totalorder %s32, 1
      %p263 = por %p261, %p262
      %p265 = scmp.ne.s32.totalorder %s250, %s264
      %p266 = scmp.eq.s32.totalorder %s32, 0
      %p267 = por %p265, %p266
      %s268 = ssub.s32 %s33, %s45
      %s269 = ssub.s32 %s34, %s41
      %s270 = sor.u32 %s268, %s269
      %p271 = scmp.eq.s32.totalorder %s270, 0
      %s273 = sadd.s32 %s272, 1
      %s274 = scalar_select %p271, %s272, %s273
      %p277 = pneg %p271
      %p278 = scmp.eq.s32.totalorder %s26, 1
      %p279 = por %p277, %p278
      %p280 = scmp.ne.s32.totalorder %s272, %s275
      %p281 = scmp.eq.s32.totalorder %s26, 0
      %p282 = por %p280, %p281
      %p283 = scmp.ne.s32.totalorder %s272, %s275
      %p284 = scmp.eq.s32.totalorder %s31, 1
      %p285 = por %p283, %p284
      %p286 = scmp.ne.s32.totalorder %s275, %s276
      %p287 = scmp.eq.s32.totalorder %s31, 0
      %p288 = por %p286, %p287
      %p289 = scmp.ne.s32.totalorder %s275, %s276
      %p290 = scmp.eq.s32.totalorder %s32, 1
      %p291 = por %p289, %p290
      %p293 = scmp.ne.s32.totalorder %s276, %s292
      %p294 = scmp.eq.s32.totalorder %s32, 0
      %p295 = por %p293, %p294
      %p296 = scmp.le.s32.totalorder 1, %s26
      %p297 = scmp.lt.s32.totalorder %s26, 3
      %p298 = pnand %p296, %p297
      %p299 = pneg %p298
      // Predicated region
      $region9: #{tpu_custom_call.1} parent=5 // pred_check
        _
      $region10: #{tpu_custom_call.1} parent=5 // pred_check_branch
        %301 = sbr.rel (%p298) target = $region12
      $region11: #{tpu_custom_call.1} parent=5 // pred_region
        %s302 = ssub.s32 %s26, 1
        // Predicated region
        $region13: #{tpu_custom_call.1} parent=11 // pred_check
          %p303 = pneg %p113
        $region14: #{tpu_custom_call.1} parent=11 // pred_check_branch
          %305 = sbr.rel (%p303) target = $region16
        $region15: #{tpu_custom_call.1} parent=11 // pred_region
          %s307 = ssub.s32 512, 512
          %308 = vsyncadd [#allocation8], %s307
          %s309 = sshll.u32 [#allocation9], 4
          %s310 = int_to_ptr.vmem [resolvable:$true] %s309
          %315 = dma.hbm_to_vmem [thread:$0]  %s2, 512, %s310, [#allocation8], 128, 128, 8
        $region16: #{tpu_custom_call.1} parent=11 // pred_fallthru
          _
        // Predicated region
        $region17: #{tpu_custom_call.1} parent=11 // pred_check
          %p316 = pneg %p134
        $region18: #{tpu_custom_call.1} parent=11 // pred_check_branch
          %318 = sbr.rel (%p316) target = $region20
        $region19: #{tpu_custom_call.1} parent=11 // pred_region
          _
        $region20: #{tpu_custom_call.1} parent=11 // pred_fallthru
          _
        // Predicated region
        $region21: #{tpu_custom_call.1} parent=11 // pred_check
          %p319 = pneg %p155
        $region22: #{tpu_custom_call.1} parent=11 // pred_check_branch
          %321 = sbr.rel (%p319) target = $region24
        $region23: #{tpu_custom_call.1} parent=11 // pred_region
          %s323 = ssub.s32 512, 512
          %324 = vsyncadd [#allocation11], %s323
          %s325 = sshll.u32 [#allocation10], 4
          %s326 = int_to_ptr.vmem [resolvable:$true] %s325
          %331 = dma.hbm_to_vmem [thread:$0]  %s4, 512, %s326, [#allocation11], 128, 128, 8
        $region24: #{tpu_custom_call.1} parent=11 // pred_fallthru
          _
        // Predicated region
        $region25: #{tpu_custom_call.1} parent=11 // pred_check
          %p332 = pneg %p176
        $region26: #{tpu_custom_call.1} parent=11 // pred_check_branch
          %334 = sbr.rel (%p332) target = $region28
        $region27: #{tpu_custom_call.1} parent=11 // pred_region
          _
        $region28: #{tpu_custom_call.1} parent=11 // pred_fallthru
          _
        // Predicated region
        $region29: #{tpu_custom_call.1} parent=11 // pred_check
          %p335 = pneg %p197
        $region30: #{tpu_custom_call.1} parent=11 // pred_check_branch
          %337 = sbr.rel (%p335) target = $region32
        $region31: #{tpu_custom_call.1} parent=11 // pred_region
          %s339 = ssub.s32 512, 512
          %340 = vsyncadd [#allocation11], %s339
          %s341 = sshll.u32 [#allocation12], 4
          %s342 = int_to_ptr.vmem [resolvable:$true] %s341
          %347 = dma.hbm_to_vmem [thread:$0]  %s6, 512, %s342, [#allocation11], 128, 128, 8
        $region32: #{tpu_custom_call.1} parent=11 // pred_fallthru
          _
        // Predicated region
        $region33: #{tpu_custom_call.1} parent=11 // pred_check
          %p348 = pneg %p218
        $region34: #{tpu_custom_call.1} parent=11 // pred_check_branch
          %350 = sbr.rel (%p348) target = $region36
        $region35: #{tpu_custom_call.1} parent=11 // pred_region
          _
        $region36: #{tpu_custom_call.1} parent=11 // pred_fallthru
          _
        // Predicated region
        $region37: #{tpu_custom_call.1} parent=11 // pred_check
          %p351 = pneg %p239
        $region38: #{tpu_custom_call.1} parent=11 // pred_check_branch
          %353 = sbr.rel (%p351) target = $region40
        $region39: #{tpu_custom_call.1} parent=11 // pred_region
          _
        $region40: #{tpu_custom_call.1} parent=11 // pred_fallthru
          _
        // Predicated region
        $region41: #{tpu_custom_call.1} parent=11 // pred_check
          %p354 = pneg %p260
        $region42: #{tpu_custom_call.1} parent=11 // pred_check_branch
          %356 = sbr.rel (%p354) target = $region44
        $region43: #{tpu_custom_call.1} parent=11 // pred_region
          _
        $region44: #{tpu_custom_call.1} parent=11 // pred_fallthru
          _
      $region12: #{tpu_custom_call.1} parent=5 // pred_fallthru
        _
      %p357 = scmp.lt.s32.totalorder %s26, 2
      // Predicated region
      $region45: #{tpu_custom_call.1} parent=5 // pred_check
        %p358 = pneg %p357
      $region46: #{tpu_custom_call.1} parent=5 // pred_check_branch
        %360 = sbr.rel (%p358) target = $region48
      $region47: #{tpu_custom_call.1} parent=5 // pred_region
        // Predicated region
        $region49: #{tpu_custom_call.1} parent=47 // pred_check
          %p361 = pneg %p60
        $region50: #{tpu_custom_call.1} parent=47 // pred_check_branch
          %363 = sbr.rel (%p361) target = $region52
        $region51: #{tpu_custom_call.1} parent=47 // pred_region
          %s364 = sand.u32 %s50, 1
          %s365 = scalar_lea.sflag [#allocation5], %s364
          %s366 = sand.u32 %s50, 1
          %s367 = smul.addr %s366, 8
          %s368 = scalar_lea.vmem [#allocation4], %s367
          %s370 = ssub.s32 128, 128
          %371 = vsyncadd %s365, %s370
          %s372 = sadd.s32 %s34, %s33
          %s373 = smul.addr %s372, 128
          %s374 = scalar_lea.hbm %s0, %s373
          %s376 = sshll.u32 %s368, 4
          %s377 = int_to_ptr.vmem [resolvable:$true] %s376
          %379 = dma.hbm_to_vmem [thread:$0]  %s374, 128, %s377, %s365
        $region52: #{tpu_custom_call.1} parent=47 // pred_fallthru
          _
        // Predicated region
        $region53: #{tpu_custom_call.1} parent=47 // pred_check
          %p380 = pneg %p86
        $region54: #{tpu_custom_call.1} parent=47 // pred_check_branch
          %382 = sbr.rel (%p380) target = $region56
        $region55: #{tpu_custom_call.1} parent=47 // pred_region
          %s383 = sand.u32 %s26, 1
          %s384 = scalar_lea.sflag [#allocation8], %s383
          %s385 = sand.u32 %s76, 1
          %s386 = smul.addr %s385, 8
          %s387 = scalar_lea.vmem [#allocation7], %s386
          %s389 = ssub.s32 128, 128
          %390 = vsyncadd %s384, %s389
          %s391 = smul.addr %s33, 128
          %s392 = scalar_lea.hbm %s1, %s391
          %s394 = sshll.u32 %s387, 4
          %s395 = int_to_ptr.vmem [resolvable:$true] %s394
          %397 = dma.hbm_to_vmem [thread:$0]  %s392, 128, %s395, %s384
        $region56: #{tpu_custom_call.1} parent=47 // pred_fallthru
          _
      $region48: #{tpu_custom_call.1} parent=5 // pred_fallthru
        _
      %p398 = scmp.le.s32.totalorder 1, %s26
      %p399 = scmp.lt.s32.totalorder %s26, 3
      %p400 = pnand %p398, %p399
      %p401 = pneg %p400
      // Predicated region
      $region57: #{tpu_custom_call.1} parent=5 // pred_check
        _
      $region58: #{tpu_custom_call.1} parent=5 // pred_check_branch
        %403 = sbr.rel (%p400) target = $region60
      $region59: #{tpu_custom_call.1} parent=5 // pred_region
        %s404 = ssub.s32 %s26, 1
        %s405 = sand.u32 %s53, 1
        %s406 = scalar_lea.sflag [#allocation5], %s405
        %s407 = sand.u32 %s53, 1
        %s408 = smul.addr %s407, 8
        %s409 = scalar_lea.vmem [#allocation4], %s408
        // Predicated region
        $region61: #{tpu_custom_call.1} parent=59 // pred_check
          %p410 = pneg %p66
        $region62: #{tpu_custom_call.1} parent=59 // pred_check_branch
          %412 = sbr.rel (%p410) target = $region64
        $region63: #{tpu_custom_call.1} parent=59 // pred_region
          %413 = dma.done %s406, 128
        $region64: #{tpu_custom_call.1} parent=59 // pred_fallthru
          _
        %s414 = sand.u32 %s31, 1
        %s415 = scalar_lea.sflag [#allocation8], %s414
        %s416 = sand.u32 %s79, 1
        %s417 = smul.addr %s416, 8
        %s418 = scalar_lea.vmem [#allocation7], %s417
        // Predicated region
        $region65: #{tpu_custom_call.1} parent=59 // pred_check
          %p419 = pneg %p92
        $region66: #{tpu_custom_call.1} parent=59 // pred_check_branch
          %421 = sbr.rel (%p419) target = $region68
        $region67: #{tpu_custom_call.1} parent=59 // pred_region
          %422 = dma.done %s415, 128
        $region68: #{tpu_custom_call.1} parent=59 // pred_fallthru
          _
        // Predicated region
        $region69: #{tpu_custom_call.1} parent=59 // pred_check
          %p423 = pneg %p113
        $region70: #{tpu_custom_call.1} parent=59 // pred_check_branch
          %425 = sbr.rel (%p423) target = $region72
        $region71: #{tpu_custom_call.1} parent=59 // pred_region
          %426 = dma.done [#allocation8], 512
        $region72: #{tpu_custom_call.1} parent=59 // pred_fallthru
          _
        // Predicated region
        $region73: #{tpu_custom_call.1} parent=59 // pred_check
          %p427 = pneg %p155
        $region74: #{tpu_custom_call.1} parent=59 // pred_check_branch
          %429 = sbr.rel (%p427) target = $region76
        $region75: #{tpu_custom_call.1} parent=59 // pred_region
          %430 = dma.done [#allocation11], 512
        $region76: #{tpu_custom_call.1} parent=59 // pred_fallthru
          _
        // Predicated region
        $region77: #{tpu_custom_call.1} parent=59 // pred_check
          %p431 = pneg %p197
        $region78: #{tpu_custom_call.1} parent=59 // pred_check_branch
          %433 = sbr.rel (%p431) target = $region80
        $region79: #{tpu_custom_call.1} parent=59 // pred_region
          %434 = dma.done [#allocation11], 512
        $region80: #{tpu_custom_call.1} parent=59 // pred_fallthru
          _
        %s435 = sand.u32 %s53, 1
        %s436 = scalar_lea.sflag [#allocation5], %s435
        %s437 = sand.u32 %s53, 1
        %s438 = smul.addr %s437, 8
        %s439 = scalar_lea.vmem [#allocation4], %s438
        %p440 = pneg %p66
        %p441 = pneg %p63
        %s442 = sand.u32 %s31, 1
        %s443 = scalar_lea.sflag [#allocation8], %s442
        %s444 = sand.u32 %s79, 1
        %s445 = smul.addr %s444, 8
        %s446 = scalar_lea.vmem [#allocation7], %s445
        %p447 = pneg %p92
        %p448 = pneg %p89
        %p449 = pneg %p113
        %p450 = pneg %p110
        %p451 = pneg %p134
        %p452 = pneg %p131
        %p453 = pneg %p155
        %p454 = pneg %p152
        %p455 = pneg %p176
        %p456 = pneg %p173
        %p457 = pneg %p197
        %p458 = pneg %p194
        %p459 = pneg %p218
        %p460 = pneg %p215
        %p461 = pneg %p239
        %p462 = pneg %p236
        %p463 = pneg %p260
        %p464 = pneg %p257
        %p465 = pneg %p288
        %p466 = pneg %p285
        %s467 = sand.u32 %s275, 1
        %s468 = scalar_lea.sflag [#allocation6], %s467
        %s469 = sand.u32 %s275, 1
        %s470 = smul.addr %s469, 8
        %s471 = scalar_lea.vmem [#allocation13], %s470
        %v472 = vld [vmem:[%s409] sm:$0xff]
        %p473 = scmp.eq.s32.totalorder %s36, 0
        // Predicated region
        $region81: #{tpu_custom_call.1} parent=59 // pred_check
          %p474 = pneg %p473
        $region82: #{tpu_custom_call.1} parent=59 // pred_check_branch
          %476 = sbr.rel (%p474) target = $region84
        $region83: #{tpu_custom_call.1} parent=59 // pred_region
          %v477 = vld [vmem:[%s418] sm:$0xff]
          %v478 = vld [vmem:[#allocation10] sm:$0xff]
          %v479 = vld [vmem:[#allocation10 + $0x8] sm:$0xff]
          %v480 = vld [vmem:[#allocation10 + $0x10] sm:$0xff]
          %v481 = vld [vmem:[#allocation10 + $0x18] sm:$0xff]
          %v482 = vld [vmem:[%s5] sm:$0x1]
          %v484 = vlaneseq
          %v485 = vshrl.u32 %v484, 7
          %v486 = vsub.s32 0, %v485
          %v487 = vrot.slane %v482, %v486
          %vm489 = vcmask 261120
          %v491 = vsel %vm489, %v477, 0
          %493 = vmatprep.subr.mxu0 0.0
          %494 = vmatpush1.msra.mxu0 0.0
          %495 = vmatprep.subr.mxu0 0.0
          %496 = vmatpush1.msra.mxu0 0.0
          %497 = vmatprep.subr.mxu0 0.0
          %498 = vmatpush1.msra.mxu0 0.0
          %499 = vmatprep.subr.mxu0 0.0
          %500 = vmatpush1.msra.mxu0 0.0
          %501 = vmatprep.subr.mxu0 0.0
          %502 = vmatpush1.msra.mxu0 0.0
          %503 = vmatprep.subr.mxu0 0.0
          %504 = vmatpush1.msra.mxu0 0.0
          %505 = vmatprep.subr.mxu0 0.0
          %506 = vmatpush1.msra.mxu0 0.0
          %507 = vmatprep.subr.mxu0 0.0
          %508 = vmatpush1.msra.mxu0 0.0
          %509 = vmatprep.subr.mxu0 0.0
          %510 = vmatpush1.msra.mxu0 0.0
          %511 = vmatprep.subr.mxu0 0.0
          %512 = vmatpush1.msra.mxu0 0.0
          %513 = vmatprep.subr.mxu0 0.0
          %514 = vmatpush1.msra.mxu0 0.0
          %515 = vmatprep.subr.mxu0 0.0
          %516 = vmatpush1.msra.mxu0 0.0
          %517 = vmatprep.subr.mxu0 0.0
          %518 = vmatpush1.msra.mxu0 %v481
          %519 = vmatprep.subr.mxu0 0.0
          %520 = vmatpush1.msra.mxu0 %v480
          %521 = vmatprep.subr.mxu0 0.0
          %522 = vmatpush1.msra.mxu0 %v479
          %523 = vmatprep.subr.mxu0 0.0
          %524 = vmatpush1.msra.mxu0 %v478
          %525 = vmatprep.subr.mxu0 0.0
          %526 = vmatpush2.msra.mxu0 0.0
          %527 = vmatprep.subr.mxu0 0.0
          %528 = vmatpush2.msra.mxu0 0.0
          %529 = vmatprep.subr.mxu0 0.0
          %530 = vmatpush2.msra.mxu0 0.0
          %531 = vmatprep.subr.mxu0 0.0
          %532 = vmatpush2.msra.mxu0 0.0
          %533 = vmatprep.subr.mxu0 0.0
          %534 = vmatpush2.msra.mxu0 0.0
          %535 = vmatprep.subr.mxu0 0.0
          %536 = vmatpush2.msra.mxu0 0.0
          %537 = vmatprep.subr.mxu0 0.0
          %538 = vmatpush2.msra.mxu0 0.0
          %539 = vmatprep.subr.mxu0 0.0
          %540 = vmatpush2.msra.mxu0 0.0
          %541 = vmatprep.subr.mxu0 0.0
          %542 = vmatpush2.msra.mxu0 0.0
          %543 = vmatprep.subr.mxu0 0.0
          %544 = vmatpush2.msra.mxu0 0.0
          %545 = vmatprep.subr.mxu0 0.0
          %546 = vmatpush2.msra.mxu0 0.0
          %547 = vmatprep.subr.mxu0 0.0
          %548 = vmatpush2.msra.mxu0 0.0
          %549 = vmatprep.subr.mxu0 0.0
          %550 = vmatpush2.msra.mxu0 0.0
          %551 = vmatprep.subr.mxu0 0.0
          %552 = vmatpush2.msra.mxu0 0.0
          %553 = vmatprep.subr.mxu0 0.0
          %554 = vmatpush2.msra.mxu0 0.0
          %555 = vmatprep.subr.mxu0 0.0
          %556 = vmatpush2.msra.mxu0 0.0
          %557 = vmatprep.mubr.f32.mxu0 0.0
          %558 = vmatmul.mubr.f32.gmra.mxu0 %v491
          %v559 = vpop.f32.mrf.mxu0
          %v560 = vadd.f32 %v487, %v559
          %v561 = vpop.f32.mrf.mxu0
          %562 = vdwg.mxu0
          %vm563 = vcmask 523264
          %564 = vst.msk [vmem:[#allocation2] sm:$0xff] %vm563, %v560
        $region84: #{tpu_custom_call.1} parent=59 // pred_fallthru
          _
        %v565 = vld [vmem:[#allocation9] sm:$0xff]
        %v566 = vld [vmem:[#allocation9 + $0x8] sm:$0xff]
        %v567 = vld [vmem:[#allocation9 + $0x10] sm:$0xff]
        %v568 = vld [vmem:[#allocation9 + $0x18] sm:$0xff]
        %v569 = vld [vmem:[%s3] sm:$0x1]
        %v571 = vlaneseq
        %v572 = vshrl.u32 %v571, 7
        %v573 = vsub.s32 0, %v572
        %v574 = vrot.slane %v569, %v573
        %vm576 = vcmask 261120
        %v578 = vsel %vm576, %v472, 0
        %580 = vmatprep.subr.mxu0 0.0
        %581 = vmatpush1.msra.mxu0 0.0
        %582 = vmatprep.subr.mxu0 0.0
        %583 = vmatpush1.msra.mxu0 0.0
        %584 = vmatprep.subr.mxu0 0.0
        %585 = vmatpush1.msra.mxu0 0.0
        %586 = vmatprep.subr.mxu0 0.0
        %587 = vmatpush1.msra.mxu0 0.0
        %588 = vmatprep.subr.mxu0 0.0
        %589 = vmatpush1.msra.mxu0 0.0
        %590 = vmatprep.subr.mxu0 0.0
        %591 = vmatpush1.msra.mxu0 0.0
        %592 = vmatprep.subr.mxu0 0.0
        %593 = vmatpush1.msra.mxu0 0.0
        %594 = vmatprep.subr.mxu0 0.0
        %595 = vmatpush1.msra.mxu0 0.0
        %596 = vmatprep.subr.mxu0 0.0
        %597 = vmatpush1.msra.mxu0 0.0
        %598 = vmatprep.subr.mxu0 0.0
        %599 = vmatpush1.msra.mxu0 0.0
        %600 = vmatprep.subr.mxu0 0.0
        %601 = vmatpush1.msra.mxu0 0.0
        %602 = vmatprep.subr.mxu0 0.0
        %603 = vmatpush1.msra.mxu0 0.0
        %604 = vmatprep.subr.mxu0 0.0
        %605 = vmatpush1.msra.mxu0 %v568
        %606 = vmatprep.subr.mxu0 0.0
        %607 = vmatpush1.msra.mxu0 %v567
        %608 = vmatprep.subr.mxu0 0.0
        %609 = vmatpush1.msra.mxu0 %v566
        %610 = vmatprep.subr.mxu0 0.0
        %611 = vmatpush1.msra.mxu0 %v565
        %612 = vmatprep.subr.mxu0 0.0
        %613 = vmatpush2.msra.mxu0 0.0
        %614 = vmatprep.subr.mxu0 0.0
        %615 = vmatpush2.msra.mxu0 0.0
        %616 = vmatprep.subr.mxu0 0.0
        %617 = vmatpush2.msra.mxu0 0.0
        %618 = vmatprep.subr.mxu0 0.0
        %619 = vmatpush2.msra.mxu0 0.0
        %620 = vmatprep.subr.mxu0 0.0
        %621 = vmatpush2.msra.mxu0 0.0
        %622 = vmatprep.subr.mxu0 0.0
        %623 = vmatpush2.msra.mxu0 0.0
        %624 = vmatprep.subr.mxu0 0.0
        %625 = vmatpush2.msra.mxu0 0.0
        %626 = vmatprep.subr.mxu0 0.0
        %627 = vmatpush2.msra.mxu0 0.0
        %628 = vmatprep.subr.mxu0 0.0
        %629 = vmatpush2.msra.mxu0 0.0
        %630 = vmatprep.subr.mxu0 0.0
        %631 = vmatpush2.msra.mxu0 0.0
        %632 = vmatprep.subr.mxu0 0.0
        %633 = vmatpush2.msra.mxu0 0.0
        %634 = vmatprep.subr.mxu0 0.0
        %635 = vmatpush2.msra.mxu0 0.0
        %636 = vmatprep.subr.mxu0 0.0
        %637 = vmatpush2.msra.mxu0 0.0
        %638 = vmatprep.subr.mxu0 0.0
        %639 = vmatpush2.msra.mxu0 0.0
        %640 = vmatprep.subr.mxu0 0.0
        %641 = vmatpush2.msra.mxu0 0.0
        %642 = vmatprep.subr.mxu0 0.0
        %643 = vmatpush2.msra.mxu0 0.0
        %644 = vmatprep.mubr.f32.mxu0 0.0
        %645 = vmatmul.mubr.f32.gmra.mxu0 %v578
        %v646 = vpop.f32.mrf.mxu0
        %v647 = vadd.f32 %v574, %v646
        %v648 = vpop.f32.mrf.mxu0
        %649 = vdwg.mxu0
        %v650 = vmul.f32 %v647, 0.35355338
        %v651 = vld [vmem:[#allocation2] sm:$0xff]
        %v652 = vlaneseq
        %v653 = vshrl.u32 %v652, 7
        %s654 = smul.u32 %s36, 8
        %v655 = vstv %s654
        %v656 = vadd.s32 %v653, %v655
        %v657 = vlaneseq
        %v658 = vand.u32 %v657, 127
        %vm659 = vcmp.ge.s32.totalorder %v656, %v658
        %v660 = vsel %vm659, 0.0, -1e+09
        %vm661 = vcmask 64512
        %v663 = vsel %vm661, %v650, 0
        %v666 = vsel %vm661, %v651, 0
        %668 = vmatprep.subr.mxu0 0.0
        %669 = vmatpush1.xpose.msra.mxu0 0.0
        %670 = vmatprep.subr.mxu0 0.0
        %671 = vmatpush1.xpose.msra.mxu0 0.0
        %672 = vmatprep.subr.mxu0 0.0
        %673 = vmatpush1.xpose.msra.mxu0 0.0
        %674 = vmatprep.subr.mxu0 0.0
        %675 = vmatpush1.xpose.msra.mxu0 0.0
        %676 = vmatprep.subr.mxu0 0.0
        %677 = vmatpush1.xpose.msra.mxu0 0.0
        %678 = vmatprep.subr.mxu0 0.0
        %679 = vmatpush1.xpose.msra.mxu0 0.0
        %680 = vmatprep.subr.mxu0 0.0
        %681 = vmatpush1.xpose.msra.mxu0 0.0
        %682 = vmatprep.subr.mxu0 0.0
        %683 = vmatpush1.xpose.msra.mxu0 0.0
        %684 = vmatprep.subr.mxu0 0.0
        %685 = vmatpush1.xpose.msra.mxu0 0.0
        %686 = vmatprep.subr.mxu0 0.0
        %687 = vmatpush1.xpose.msra.mxu0 0.0
        %688 = vmatprep.subr.mxu0 0.0
        %689 = vmatpush1.xpose.msra.mxu0 0.0
        %690 = vmatprep.subr.mxu0 0.0
        %691 = vmatpush1.xpose.msra.mxu0 0.0
        %692 = vmatprep.subr.mxu0 0.0
        %693 = vmatpush1.xpose.msra.mxu0 0.0
        %694 = vmatprep.subr.mxu0 0.0
        %695 = vmatpush1.xpose.msra.mxu0 0.0
        %696 = vmatprep.subr.mxu0 0.0
        %697 = vmatpush1.xpose.msra.mxu0 0.0
        %698 = vmatprep.subr.mxu0 0.0
        %699 = vmatpush1.xpose.msra.mxu0 %v666
        %700 = vmatprep.subr.mxu0 0.0
        %701 = vmatpush2.xpose.msra.mxu0 0.0
        %702 = vmatprep.subr.mxu0 0.0
        %703 = vmatpush2.xpose.msra.mxu0 0.0
        %704 = vmatprep.subr.mxu0 0.0
        %705 = vmatpush2.xpose.msra.mxu0 0.0
        %706 = vmatprep.subr.mxu0 0.0
        %707 = vmatpush2.xpose.msra.mxu0 0.0
        %708 = vmatprep.subr.mxu0 0.0
        %709 = vmatpush2.xpose.msra.mxu0 0.0
        %710 = vmatprep.subr.mxu0 0.0
        %711 = vmatpush2.xpose.msra.mxu0 0.0
        %712 = vmatprep.subr.mxu0 0.0
        %713 = vmatpush2.xpose.msra.mxu0 0.0
        %714 = vmatprep.subr.mxu0 0.0
        %715 = vmatpush2.xpose.msra.mxu0 0.0
        %716 = vmatprep.subr.mxu0 0.0
        %717 = vmatpush2.xpose.msra.mxu0 0.0
        %718 = vmatprep.subr.mxu0 0.0
        %719 = vmatpush2.xpose.msra.mxu0 0.0
        %720 = vmatprep.subr.mxu0 0.0
        %721 = vmatpush2.xpose.msra.mxu0 0.0
        %722 = vmatprep.subr.mxu0 0.0
        %723 = vmatpush2.xpose.msra.mxu0 0.0
        %724 = vmatprep.subr.mxu0 0.0
        %725 = vmatpush2.xpose.msra.mxu0 0.0
        %726 = vmatprep.subr.mxu0 0.0
        %727 = vmatpush2.xpose.msra.mxu0 0.0
        %728 = vmatprep.subr.mxu0 0.0
        %729 = vmatpush2.xpose.msra.mxu0 0.0
        %730 = vmatprep.subr.mxu0 0.0
        %731 = vmatpush2.xpose.msra.mxu0 0.0
        %732 = vmatprep.mubr.f32.mxu0 0.0
        %733 = vmatmul.mubr.f32.gmra.mxu0 %v663
        %v734 = vpop.f32.mrf.mxu0
        %v735 = vadd.f32 %v660, %v734
        %v736 = vpop.f32.mrf.mxu0
        %737 = vdwg.mxu0
        %v738 = vsel %vm661, %v735, -inf
        %739 = vmax.xlane.f32.xlu0 %v738
        %v740 = vpop.xlane.xlu0 %739
        %v741 = vsub.f32 %v735, %v740
        %v742 = vmul.f32 %v741, 1.442695
        %v743 = vpow.pop %v742
        %v744 = vsel %vm661, %v743, 0.0
        %745 = vadd.xlane.f32.xlu0 %v744
        %v746 = vpop.xlane.xlu0 %745
        %v747 = vrcp.pop %v746
        %v748 = vmul.f32 %v743, %v747
        %749 = vrot.lane.b32.xlu0 %v651, 96
        %v750 = vpop.permute.xlu0 %749
        %v753 = vsel %vm661, %v748, 0
        %755 = vmatprep.subr.mxu0 0.0
        %756 = vmatpush1.msra.mxu0 0.0
        %757 = vmatprep.subr.mxu0 0.0
        %758 = vmatpush1.msra.mxu0 0.0
        %759 = vmatprep.subr.mxu0 0.0
        %760 = vmatpush1.msra.mxu0 0.0
        %761 = vmatprep.subr.mxu0 0.0
        %762 = vmatpush1.msra.mxu0 0.0
        %763 = vmatprep.subr.mxu0 0.0
        %764 = vmatpush1.msra.mxu0 0.0
        %765 = vmatprep.subr.mxu0 0.0
        %766 = vmatpush1.msra.mxu0 0.0
        %767 = vmatprep.subr.mxu0 0.0
        %768 = vmatpush1.msra.mxu0 0.0
        %769 = vmatprep.subr.mxu0 0.0
        %770 = vmatpush1.msra.mxu0 0.0
        %771 = vmatprep.subr.mxu0 0.0
        %772 = vmatpush1.msra.mxu0 0.0
        %773 = vmatprep.subr.mxu0 0.0
        %774 = vmatpush1.msra.mxu0 0.0
        %775 = vmatprep.subr.mxu0 0.0
        %776 = vmatpush1.msra.mxu0 0.0
        %777 = vmatprep.subr.mxu0 0.0
        %778 = vmatpush1.msra.mxu0 0.0
        %779 = vmatprep.subr.mxu0 0.0
        %780 = vmatpush1.msra.mxu0 0.0
        %781 = vmatprep.subr.mxu0 0.0
        %782 = vmatpush1.msra.mxu0 0.0
        %783 = vmatprep.subr.mxu0 0.0
        %784 = vmatpush1.msra.mxu0 0.0
        %785 = vmatprep.subr.mxu0 0.0
        %786 = vmatpush1.msra.mxu0 %v750
        %787 = vmatprep.subr.mxu0 0.0
        %788 = vmatpush2.msra.mxu0 0.0
        %789 = vmatprep.subr.mxu0 0.0
        %790 = vmatpush2.msra.mxu0 0.0
        %791 = vmatprep.subr.mxu0 0.0
        %792 = vmatpush2.msra.mxu0 0.0
        %793 = vmatprep.subr.mxu0 0.0
        %794 = vmatpush2.msra.mxu0 0.0
        %795 = vmatprep.subr.mxu0 0.0
        %796 = vmatpush2.msra.mxu0 0.0
        %797 = vmatprep.subr.mxu0 0.0
        %798 = vmatpush2.msra.mxu0 0.0
        %799 = vmatprep.subr.mxu0 0.0
        %800 = vmatpush2.msra.mxu0 0.0
        %801 = vmatprep.subr.mxu0 0.0
        %802 = vmatpush2.msra.mxu0 0.0
        %803 = vmatprep.subr.mxu0 0.0
        %804 = vmatpush2.msra.mxu0 0.0
        %805 = vmatprep.subr.mxu0 0.0
        %806 = vmatpush2.msra.mxu0 0.0
        %807 = vmatprep.subr.mxu0 0.0
        %808 = vmatpush2.msra.mxu0 0.0
        %809 = vmatprep.subr.mxu0 0.0
        %810 = vmatpush2.msra.mxu0 0.0
        %811 = vmatprep.subr.mxu0 0.0
        %812 = vmatpush2.msra.mxu0 0.0
        %813 = vmatprep.subr.mxu0 0.0
        %814 = vmatpush2.msra.mxu0 0.0
        %815 = vmatprep.subr.mxu0 0.0
        %816 = vmatpush2.msra.mxu0 0.0
        %817 = vmatprep.subr.mxu0 0.0
        %818 = vmatpush2.msra.mxu0 0.0
        %819 = vmatprep.mubr.f32.mxu0 0.0
        %820 = vmatmul.mubr.f32.gmra.mxu0 %v753
        %v821 = vpop.f32.mrf.mxu0
        %v822 = vadd.f32 0.0, %v821
        %v823 = vpop.f32.mrf.mxu0
        %824 = vdwg.mxu0
        %825 = vst.msk [vmem:[#allocation3] sm:$0xff] %vm661, %v822
        %826 = vrot.lane.b32.xlu0 %v650, 120
        %v827 = vpop.permute.xlu0 %826
        %828 = vrot.lane.b32.xlu0 %v651, 120
        %v829 = vpop.permute.xlu0 %828
        %v830 = vsel %vm661, %v827, 0
        %v832 = vsel %vm661, %v829, 0
        %834 = vmatprep.subr.mxu0 0.0
        %835 = vmatpush1.xpose.msra.mxu0 0.0
        %836 = vmatprep.subr.mxu0 0.0
        %837 = vmatpush1.xpose.msra.mxu0 0.0
        %838 = vmatprep.subr.mxu0 0.0
        %839 = vmatpush1.xpose.msra.mxu0 0.0
        %840 = vmatprep.subr.mxu0 0.0
        %841 = vmatpush1.xpose.msra.mxu0 0.0
        %842 = vmatprep.subr.mxu0 0.0
        %843 = vmatpush1.xpose.msra.mxu0 0.0
        %844 = vmatprep.subr.mxu0 0.0
        %845 = vmatpush1.xpose.msra.mxu0 0.0
        %846 = vmatprep.subr.mxu0 0.0
        %847 = vmatpush1.xpose.msra.mxu0 0.0
        %848 = vmatprep.subr.mxu0 0.0
        %849 = vmatpush1.xpose.msra.mxu0 0.0
        %850 = vmatprep.subr.mxu0 0.0
        %851 = vmatpush1.xpose.msra.mxu0 0.0
        %852 = vmatprep.subr.mxu0 0.0
        %853 = vmatpush1.xpose.msra.mxu0 0.0
        %854 = vmatprep.subr.mxu0 0.0
        %855 = vmatpush1.xpose.msra.mxu0 0.0
        %856 = vmatprep.subr.mxu0 0.0
        %857 = vmatpush1.xpose.msra.mxu0 0.0
        %858 = vmatprep.subr.mxu0 0.0
        %859 = vmatpush1.xpose.msra.mxu0 0.0
        %860 = vmatprep.subr.mxu0 0.0
        %861 = vmatpush1.xpose.msra.mxu0 0.0
        %862 = vmatprep.subr.mxu0 0.0
        %863 = vmatpush1.xpose.msra.mxu0 0.0
        %864 = vmatprep.subr.mxu0 0.0
        %865 = vmatpush1.xpose.msra.mxu0 %v832
        %866 = vmatprep.subr.mxu0 0.0
        %867 = vmatpush2.xpose.msra.mxu0 0.0
        %868 = vmatprep.subr.mxu0 0.0
        %869 = vmatpush2.xpose.msra.mxu0 0.0
        %870 = vmatprep.subr.mxu0 0.0
        %871 = vmatpush2.xpose.msra.mxu0 0.0
        %872 = vmatprep.subr.mxu0 0.0
        %873 = vmatpush2.xpose.msra.mxu0 0.0
        %874 = vmatprep.subr.mxu0 0.0
        %875 = vmatpush2.xpose.msra.mxu0 0.0
        %876 = vmatprep.subr.mxu0 0.0
        %877 = vmatpush2.xpose.msra.mxu0 0.0
        %878 = vmatprep.subr.mxu0 0.0
        %879 = vmatpush2.xpose.msra.mxu0 0.0
        %880 = vmatprep.subr.mxu0 0.0
        %881 = vmatpush2.xpose.msra.mxu0 0.0
        %882 = vmatprep.subr.mxu0 0.0
        %883 = vmatpush2.xpose.msra.mxu0 0.0
        %884 = vmatprep.subr.mxu0 0.0
        %885 = vmatpush2.xpose.msra.mxu0 0.0
        %886 = vmatprep.subr.mxu0 0.0
        %887 = vmatpush2.xpose.msra.mxu0 0.0
        %888 = vmatprep.subr.mxu0 0.0
        %889 = vmatpush2.xpose.msra.mxu0 0.0
        %890 = vmatprep.subr.mxu0 0.0
        %891 = vmatpush2.xpose.msra.mxu0 0.0
        %892 = vmatprep.subr.mxu0 0.0
        %893 = vmatpush2.xpose.msra.mxu0 0.0
        %894 = vmatprep.subr.mxu0 0.0
        %895 = vmatpush2.xpose.msra.mxu0 0.0
        %896 = vmatprep.subr.mxu0 0.0
        %897 = vmatpush2.xpose.msra.mxu0 0.0
        %898 = vmatprep.mubr.f32.mxu0 0.0
        %899 = vmatmul.mubr.f32.gmra.mxu0 %v830
        %v900 = vpop.f32.mrf.mxu0
        %v901 = vadd.f32 %v660, %v900
        %v902 = vpop.f32.mrf.mxu0
        %903 = vdwg.mxu0
        %v904 = vsel %vm661, %v901, -inf
        %905 = vmax.xlane.f32.xlu0 %v904
        %v906 = vpop.xlane.xlu0 %905
        %v907 = vsub.f32 %v901, %v906
        %v908 = vmul.f32 %v907, 1.442695
        %v909 = vpow.pop %v908
        %v910 = vsel %vm661, %v909, 0.0
        %911 = vadd.xlane.f32.xlu0 %v910
        %v912 = vpop.xlane.xlu0 %911
        %v913 = vrcp.pop %v912
        %v914 = vmul.f32 %v909, %v913
        %915 = vrot.lane.b32.xlu0 %v651, 88
        %v916 = vpop.permute.xlu0 %915
        %v919 = vsel %vm661, %v914, 0
        %921 = vmatprep.subr.mxu0 0.0
        %922 = vmatpush1.msra.mxu0 0.0
        %923 = vmatprep.subr.mxu0 0.0
        %924 = vmatpush1.msra.mxu0 0.0
        %925 = vmatprep.subr.mxu0 0.0
        %926 = vmatpush1.msra.mxu0 0.0
        %927 = vmatprep.subr.mxu0 0.0
        %928 = vmatpush1.msra.mxu0 0.0
        %929 = vmatprep.subr.mxu0 0.0
        %930 = vmatpush1.msra.mxu0 0.0
        %931 = vmatprep.subr.mxu0 0.0
        %932 = vmatpush1.msra.mxu0 0.0
        %933 = vmatprep.subr.mxu0 0.0
        %934 = vmatpush1.msra.mxu0 0.0
        %935 = vmatprep.subr.mxu0 0.0
        %936 = vmatpush1.msra.mxu0 0.0
        %937 = vmatprep.subr.mxu0 0.0
        %938 = vmatpush1.msra.mxu0 0.0
        %939 = vmatprep.subr.mxu0 0.0
        %940 = vmatpush1.msra.mxu0 0.0
        %941 = vmatprep.subr.mxu0 0.0
        %942 = vmatpush1.msra.mxu0 0.0
        %943 = vmatprep.subr.mxu0 0.0
        %944 = vmatpush1.msra.mxu0 0.0
        %945 = vmatprep.subr.mxu0 0.0
        %946 = vmatpush1.msra.mxu0 0.0
        %947 = vmatprep.subr.mxu0 0.0
        %948 = vmatpush1.msra.mxu0 0.0
        %949 = vmatprep.subr.mxu0 0.0
        %950 = vmatpush1.msra.mxu0 0.0
        %951 = vmatprep.subr.mxu0 0.0
        %952 = vmatpush1.msra.mxu0 %v916
        %953 = vmatprep.subr.mxu0 0.0
        %954 = vmatpush2.msra.mxu0 0.0
        %955 = vmatprep.subr.mxu0 0.0
        %956 = vmatpush2.msra.mxu0 0.0
        %957 = vmatprep.subr.mxu0 0.0
        %958 = vmatpush2.msra.mxu0 0.0
        %959 = vmatprep.subr.mxu0 0.0
        %960 = vmatpush2.msra.mxu0 0.0
        %961 = vmatprep.subr.mxu0 0.0
        %962 = vmatpush2.msra.mxu0 0.0
        %963 = vmatprep.subr.mxu0 0.0
        %964 = vmatpush2.msra.mxu0 0.0
        %965 = vmatprep.subr.mxu0 0.0
        %966 = vmatpush2.msra.mxu0 0.0
        %967 = vmatprep.subr.mxu0 0.0
        %968 = vmatpush2.msra.mxu0 0.0
        %969 = vmatprep.subr.mxu0 0.0
        %970 = vmatpush2.msra.mxu0 0.0
        %971 = vmatprep.subr.mxu0 0.0
        %972 = vmatpush2.msra.mxu0 0.0
        %973 = vmatprep.subr.mxu0 0.0
        %974 = vmatpush2.msra.mxu0 0.0
        %975 = vmatprep.subr.mxu0 0.0
        %976 = vmatpush2.msra.mxu0 0.0
        %977 = vmatprep.subr.mxu0 0.0
        %978 = vmatpush2.msra.mxu0 0.0
        %979 = vmatprep.subr.mxu0 0.0
        %980 = vmatpush2.msra.mxu0 0.0
        %981 = vmatprep.subr.mxu0 0.0
        %982 = vmatpush2.msra.mxu0 0.0
        %983 = vmatprep.subr.mxu0 0.0
        %984 = vmatpush2.msra.mxu0 0.0
        %985 = vmatprep.mubr.f32.mxu0 0.0
        %986 = vmatmul.mubr.f32.gmra.mxu0 %v919
        %v987 = vpop.f32.mrf.mxu0
        %v988 = vadd.f32 0.0, %v987
        %v989 = vpop.f32.mrf.mxu0
        %990 = vdwg.mxu0
        %992 = vrot.lane.b32.xlu0 %v988, 8
        %v993 = vpop.permute.xlu0 %992
        %vm995 = vcmask 130112
        %996 = vst.msk [vmem:[#allocation3] sm:$0xff] %vm995, %v993
        %997 = vrot.lane.b32.xlu0 %v650, 112
        %v998 = vpop.permute.xlu0 %997
        %999 = vrot.lane.b32.xlu0 %v651, 112
        %v1000 = vpop.permute.xlu0 %999
        %v1001 = vsel %vm661, %v998, 0
        %v1003 = vsel %vm661, %v1000, 0
        %1005 = vmatprep.subr.mxu0 0.0
        %1006 = vmatpush1.xpose.msra.mxu0 0.0
        %1007 = vmatprep.subr.mxu0 0.0
        %1008 = vmatpush1.xpose.msra.mxu0 0.0
        %1009 = vmatprep.subr.mxu0 0.0
        %1010 = vmatpush1.xpose.msra.mxu0 0.0
        %1011 = vmatprep.subr.mxu0 0.0
        %1012 = vmatpush1.xpose.msra.mxu0 0.0
        %1013 = vmatprep.subr.mxu0 0.0
        %1014 = vmatpush1.xpose.msra.mxu0 0.0
        %1015 = vmatprep.subr.mxu0 0.0
        %1016 = vmatpush1.xpose.msra.mxu0 0.0
        %1017 = vmatprep.subr.mxu0 0.0
        %1018 = vmatpush1.xpose.msra.mxu0 0.0
        %1019 = vmatprep.subr.mxu0 0.0
        %1020 = vmatpush1.xpose.msra.mxu0 0.0
        %1021 = vmatprep.subr.mxu0 0.0
        %1022 = vmatpush1.xpose.msra.mxu0 0.0
        %1023 = vmatprep.subr.mxu0 0.0
        %1024 = vmatpush1.xpose.msra.mxu0 0.0
        %1025 = vmatprep.subr.mxu0 0.0
        %1026 = vmatpush1.xpose.msra.mxu0 0.0
        %1027 = vmatprep.subr.mxu0 0.0
        %1028 = vmatpush1.xpose.msra.mxu0 0.0
        %1029 = vmatprep.subr.mxu0 0.0
        %1030 = vmatpush1.xpose.msra.mxu0 0.0
        %1031 = vmatprep.subr.mxu0 0.0
        %1032 = vmatpush1.xpose.msra.mxu0 0.0
        %1033 = vmatprep.subr.mxu0 0.0
        %1034 = vmatpush1.xpose.msra.mxu0 0.0
        %1035 = vmatprep.subr.mxu0 0.0
        %1036 = vmatpush1.xpose.msra.mxu0 %v1003
        %1037 = vmatprep.subr.mxu0 0.0
        %1038 = vmatpush2.xpose.msra.mxu0 0.0
        %1039 = vmatprep.subr.mxu0 0.0
        %1040 = vmatpush2.xpose.msra.mxu0 0.0
        %1041 = vmatprep.subr.mxu0 0.0
        %1042 = vmatpush2.xpose.msra.mxu0 0.0
        %1043 = vmatprep.subr.mxu0 0.0
        %1044 = vmatpush2.xpose.msra.mxu0 0.0
        %1045 = vmatprep.subr.mxu0 0.0
        %1046 = vmatpush2.xpose.msra.mxu0 0.0
        %1047 = vmatprep.subr.mxu0 0.0
        %1048 = vmatpush2.xpose.msra.mxu0 0.0
        %1049 = vmatprep.subr.mxu0 0.0
        %1050 = vmatpush2.xpose.msra.mxu0 0.0
        %1051 = vmatprep.subr.mxu0 0.0
        %1052 = vmatpush2.xpose.msra.mxu0 0.0
        %1053 = vmatprep.subr.mxu0 0.0
        %1054 = vmatpush2.xpose.msra.mxu0 0.0
        %1055 = vmatprep.subr.mxu0 0.0
        %1056 = vmatpush2.xpose.msra.mxu0 0.0
        %1057 = vmatprep.subr.mxu0 0.0
        %1058 = vmatpush2.xpose.msra.mxu0 0.0
        %1059 = vmatprep.subr.mxu0 0.0
        %1060 = vmatpush2.xpose.msra.mxu0 0.0
        %1061 = vmatprep.subr.mxu0 0.0
        %1062 = vmatpush2.xpose.msra.mxu0 0.0
        %1063 = vmatprep.subr.mxu0 0.0
        %1064 = vmatpush2.xpose.msra.mxu0 0.0
        %1065 = vmatprep.subr.mxu0 0.0
        %1066 = vmatpush2.xpose.msra.mxu0 0.0
        %1067 = vmatprep.subr.mxu0 0.0
        %1068 = vmatpush2.xpose.msra.mxu0 0.0
        %1069 = vmatprep.mubr.f32.mxu0 0.0
        %1070 = vmatmul.mubr.f32.gmra.mxu0 %v1001
        %v1071 = vpop.f32.mrf.mxu0
        %v1072 = vadd.f32 %v660, %v1071
        %v1073 = vpop.f32.mrf.mxu0
        %1074 = vdwg.mxu0
        %v1075 = vsel %vm661, %v1072, -inf
        %1076 = vmax.xlane.f32.xlu0 %v1075
        %v1077 = vpop.xlane.xlu0 %1076
        %v1078 = vsub.f32 %v1072, %v1077
        %v1079 = vmul.f32 %v1078, 1.442695
        %v1080 = vpow.pop %v1079
        %v1081 = vsel %vm661, %v1080, 0.0
        %1082 = vadd.xlane.f32.xlu0 %v1081
        %v1083 = vpop.xlane.xlu0 %1082
        %v1084 = vrcp.pop %v1083
        %v1085 = vmul.f32 %v1080, %v1084
        %1086 = vrot.lane.b32.xlu0 %v651, 80
        %v1087 = vpop.permute.xlu0 %1086
        %v1090 = vsel %vm661, %v1085, 0
        %1092 = vmatprep.subr.mxu0 0.0
        %1093 = vmatpush1.msra.mxu0 0.0
        %1094 = vmatprep.subr.mxu0 0.0
        %1095 = vmatpush1.msra.mxu0 0.0
        %1096 = vmatprep.subr.mxu0 0.0
        %1097 = vmatpush1.msra.mxu0 0.0
        %1098 = vmatprep.subr.mxu0 0.0
        %1099 = vmatpush1.msra.mxu0 0.0
        %1100 = vmatprep.subr.mxu0 0.0
        %1101 = vmatpush1.msra.mxu0 0.0
        %1102 = vmatprep.subr.mxu0 0.0
        %1103 = vmatpush1.msra.mxu0 0.0
        %1104 = vmatprep.subr.mxu0 0.0
        %1105 = vmatpush1.msra.mxu0 0.0
        %1106 = vmatprep.subr.mxu0 0.0
        %1107 = vmatpush1.msra.mxu0 0.0
        %1108 = vmatprep.subr.mxu0 0.0
        %1109 = vmatpush1.msra.mxu0 0.0
        %1110 = vmatprep.subr.mxu0 0.0
        %1111 = vmatpush1.msra.mxu0 0.0
        %1112 = vmatprep.subr.mxu0 0.0
        %1113 = vmatpush1.msra.mxu0 0.0
        %1114 = vmatprep.subr.mxu0 0.0
        %1115 = vmatpush1.msra.mxu0 0.0
        %1116 = vmatprep.subr.mxu0 0.0
        %1117 = vmatpush1.msra.mxu0 0.0
        %1118 = vmatprep.subr.mxu0 0.0
        %1119 = vmatpush1.msra.mxu0 0.0
        %1120 = vmatprep.subr.mxu0 0.0
        %1121 = vmatpush1.msra.mxu0 0.0
        %1122 = vmatprep.subr.mxu0 0.0
        %1123 = vmatpush1.msra.mxu0 %v1087
        %1124 = vmatprep.subr.mxu0 0.0
        %1125 = vmatpush2.msra.mxu0 0.0
        %1126 = vmatprep.subr.mxu0 0.0
        %1127 = vmatpush2.msra.mxu0 0.0
        %1128 = vmatprep.subr.mxu0 0.0
        %1129 = vmatpush2.msra.mxu0 0.0
        %1130 = vmatprep.subr.mxu0 0.0
        %1131 = vmatpush2.msra.mxu0 0.0
        %1132 = vmatprep.subr.mxu0 0.0
        %1133 = vmatpush2.msra.mxu0 0.0
        %1134 = vmatprep.subr.mxu0 0.0
        %1135 = vmatpush2.msra.mxu0 0.0
        %1136 = vmatprep.subr.mxu0 0.0
        %1137 = vmatpush2.msra.mxu0 0.0
        %1138 = vmatprep.subr.mxu0 0.0
        %1139 = vmatpush2.msra.mxu0 0.0
        %1140 = vmatprep.subr.mxu0 0.0
        %1141 = vmatpush2.msra.mxu0 0.0
        %1142 = vmatprep.subr.mxu0 0.0
        %1143 = vmatpush2.msra.mxu0 0.0
        %1144 = vmatprep.subr.mxu0 0.0
        %1145 = vmatpush2.msra.mxu0 0.0
        %1146 = vmatprep.subr.mxu0 0.0
        %1147 = vmatpush2.msra.mxu0 0.0
        %1148 = vmatprep.subr.mxu0 0.0
        %1149 = vmatpush2.msra.mxu0 0.0
        %1150 = vmatprep.subr.mxu0 0.0
        %1151 = vmatpush2.msra.mxu0 0.0
        %1152 = vmatprep.subr.mxu0 0.0
        %1153 = vmatpush2.msra.mxu0 0.0
        %1154 = vmatprep.subr.mxu0 0.0
        %1155 = vmatpush2.msra.mxu0 0.0
        %1156 = vmatprep.mubr.f32.mxu0 0.0
        %1157 = vmatmul.mubr.f32.gmra.mxu0 %v1090
        %v1158 = vpop.f32.mrf.mxu0
        %v1159 = vadd.f32 0.0, %v1158
        %v1160 = vpop.f32.mrf.mxu0
        %1161 = vdwg.mxu0
        %1163 = vrot.lane.b32.xlu0 %v1159, 16
        %v1164 = vpop.permute.xlu0 %1163
        %vm1166 = vcmask 195712
        %1167 = vst.msk [vmem:[#allocation3] sm:$0xff] %vm1166, %v1164
        %1168 = vrot.lane.b32.xlu0 %v650, 104
        %v1169 = vpop.permute.xlu0 %1168
        %1170 = vrot.lane.b32.xlu0 %v651, 104
        %v1171 = vpop.permute.xlu0 %1170
        %v1172 = vsel %vm661, %v1169, 0
        %v1174 = vsel %vm661, %v1171, 0
        %1176 = vmatprep.subr.mxu0 0.0
        %1177 = vmatpush1.xpose.msra.mxu0 0.0
        %1178 = vmatprep.subr.mxu0 0.0
        %1179 = vmatpush1.xpose.msra.mxu0 0.0
        %1180 = vmatprep.subr.mxu0 0.0
        %1181 = vmatpush1.xpose.msra.mxu0 0.0
        %1182 = vmatprep.subr.mxu0 0.0
        %1183 = vmatpush1.xpose.msra.mxu0 0.0
        %1184 = vmatprep.subr.mxu0 0.0
        %1185 = vmatpush1.xpose.msra.mxu0 0.0
        %1186 = vmatprep.subr.mxu0 0.0
        %1187 = vmatpush1.xpose.msra.mxu0 0.0
        %1188 = vmatprep.subr.mxu0 0.0
        %1189 = vmatpush1.xpose.msra.mxu0 0.0
        %1190 = vmatprep.subr.mxu0 0.0
        %1191 = vmatpush1.xpose.msra.mxu0 0.0
        %1192 = vmatprep.subr.mxu0 0.0
        %1193 = vmatpush1.xpose.msra.mxu0 0.0
        %1194 = vmatprep.subr.mxu0 0.0
        %1195 = vmatpush1.xpose.msra.mxu0 0.0
        %1196 = vmatprep.subr.mxu0 0.0
        %1197 = vmatpush1.xpose.msra.mxu0 0.0
        %1198 = vmatprep.subr.mxu0 0.0
        %1199 = vmatpush1.xpose.msra.mxu0 0.0
        %1200 = vmatprep.subr.mxu0 0.0
        %1201 = vmatpush1.xpose.msra.mxu0 0.0
        %1202 = vmatprep.subr.mxu0 0.0
        %1203 = vmatpush1.xpose.msra.mxu0 0.0
        %1204 = vmatprep.subr.mxu0 0.0
        %1205 = vmatpush1.xpose.msra.mxu0 0.0
        %1206 = vmatprep.subr.mxu0 0.0
        %1207 = vmatpush1.xpose.msra.mxu0 %v1174
        %1208 = vmatprep.subr.mxu0 0.0
        %1209 = vmatpush2.xpose.msra.mxu0 0.0
        %1210 = vmatprep.subr.mxu0 0.0
        %1211 = vmatpush2.xpose.msra.mxu0 0.0
        %1212 = vmatprep.subr.mxu0 0.0
        %1213 = vmatpush2.xpose.msra.mxu0 0.0
        %1214 = vmatprep.subr.mxu0 0.0
        %1215 = vmatpush2.xpose.msra.mxu0 0.0
        %1216 = vmatprep.subr.mxu0 0.0
        %1217 = vmatpush2.xpose.msra.mxu0 0.0
        %1218 = vmatprep.subr.mxu0 0.0
        %1219 = vmatpush2.xpose.msra.mxu0 0.0
        %1220 = vmatprep.subr.mxu0 0.0
        %1221 = vmatpush2.xpose.msra.mxu0 0.0
        %1222 = vmatprep.subr.mxu0 0.0
        %1223 = vmatpush2.xpose.msra.mxu0 0.0
        %1224 = vmatprep.subr.mxu0 0.0
        %1225 = vmatpush2.xpose.msra.mxu0 0.0
        %1226 = vmatprep.subr.mxu0 0.0
        %1227 = vmatpush2.xpose.msra.mxu0 0.0
        %1228 = vmatprep.subr.mxu0 0.0
        %1229 = vmatpush2.xpose.msra.mxu0 0.0
        %1230 = vmatprep.subr.mxu0 0.0
        %1231 = vmatpush2.xpose.msra.mxu0 0.0
        %1232 = vmatprep.subr.mxu0 0.0
        %1233 = vmatpush2.xpose.msra.mxu0 0.0
        %1234 = vmatprep.subr.mxu0 0.0
        %1235 = vmatpush2.xpose.msra.mxu0 0.0
        %1236 = vmatprep.subr.mxu0 0.0
        %1237 = vmatpush2.xpose.msra.mxu0 0.0
        %1238 = vmatprep.subr.mxu0 0.0
        %1239 = vmatpush2.xpose.msra.mxu0 0.0
        %1240 = vmatprep.mubr.f32.mxu0 0.0
        %1241 = vmatmul.mubr.f32.gmra.mxu0 %v1172
        %v1242 = vpop.f32.mrf.mxu0
        %v1243 = vadd.f32 %v660, %v1242
        %v1244 = vpop.f32.mrf.mxu0
        %1245 = vdwg.mxu0
        %v1246 = vsel %vm661, %v1243, -inf
        %1247 = vmax.xlane.f32.xlu0 %v1246
        %v1248 = vpop.xlane.xlu0 %1247
        %v1249 = vsub.f32 %v1243, %v1248
        %v1250 = vmul.f32 %v1249, 1.442695
        %v1251 = vpow.pop %v1250
        %v1252 = vsel %vm661, %v1251, 0.0
        %1253 = vadd.xlane.f32.xlu0 %v1252
        %v1254 = vpop.xlane.xlu0 %1253
        %v1255 = vrcp.pop %v1254
        %v1256 = vmul.f32 %v1251, %v1255
        %1257 = vrot.lane.b32.xlu0 %v651, 72
        %v1258 = vpop.permute.xlu0 %1257
        %v1261 = vsel %vm661, %v1256, 0
        %1263 = vmatprep.subr.mxu0 0.0
        %1264 = vmatpush1.msra.mxu0 0.0
        %1265 = vmatprep.subr.mxu0 0.0
        %1266 = vmatpush1.msra.mxu0 0.0
        %1267 = vmatprep.subr.mxu0 0.0
        %1268 = vmatpush1.msra.mxu0 0.0
        %1269 = vmatprep.subr.mxu0 0.0
        %1270 = vmatpush1.msra.mxu0 0.0
        %1271 = vmatprep.subr.mxu0 0.0
        %1272 = vmatpush1.msra.mxu0 0.0
        %1273 = vmatprep.subr.mxu0 0.0
        %1274 = vmatpush1.msra.mxu0 0.0
        %1275 = vmatprep.subr.mxu0 0.0
        %1276 = vmatpush1.msra.mxu0 0.0
        %1277 = vmatprep.subr.mxu0 0.0
        %1278 = vmatpush1.msra.mxu0 0.0
        %1279 = vmatprep.subr.mxu0 0.0
        %1280 = vmatpush1.msra.mxu0 0.0
        %1281 = vmatprep.subr.mxu0 0.0
        %1282 = vmatpush1.msra.mxu0 0.0
        %1283 = vmatprep.subr.mxu0 0.0
        %1284 = vmatpush1.msra.mxu0 0.0
        %1285 = vmatprep.subr.mxu0 0.0
        %1286 = vmatpush1.msra.mxu0 0.0
        %1287 = vmatprep.subr.mxu0 0.0
        %1288 = vmatpush1.msra.mxu0 0.0
        %1289 = vmatprep.subr.mxu0 0.0
        %1290 = vmatpush1.msra.mxu0 0.0
        %1291 = vmatprep.subr.mxu0 0.0
        %1292 = vmatpush1.msra.mxu0 0.0
        %1293 = vmatprep.subr.mxu0 0.0
        %1294 = vmatpush1.msra.mxu0 %v1258
        %1295 = vmatprep.subr.mxu0 0.0
        %1296 = vmatpush2.msra.mxu0 0.0
        %1297 = vmatprep.subr.mxu0 0.0
        %1298 = vmatpush2.msra.mxu0 0.0
        %1299 = vmatprep.subr.mxu0 0.0
        %1300 = vmatpush2.msra.mxu0 0.0
        %1301 = vmatprep.subr.mxu0 0.0
        %1302 = vmatpush2.msra.mxu0 0.0
        %1303 = vmatprep.subr.mxu0 0.0
        %1304 = vmatpush2.msra.mxu0 0.0
        %1305 = vmatprep.subr.mxu0 0.0
        %1306 = vmatpush2.msra.mxu0 0.0
        %1307 = vmatprep.subr.mxu0 0.0
        %1308 = vmatpush2.msra.mxu0 0.0
        %1309 = vmatprep.subr.mxu0 0.0
        %1310 = vmatpush2.msra.mxu0 0.0
        %1311 = vmatprep.subr.mxu0 0.0
        %1312 = vmatpush2.msra.mxu0 0.0
        %1313 = vmatprep.subr.mxu0 0.0
        %1314 = vmatpush2.msra.mxu0 0.0
        %1315 = vmatprep.subr.mxu0 0.0
        %1316 = vmatpush2.msra.mxu0 0.0
        %1317 = vmatprep.subr.mxu0 0.0
        %1318 = vmatpush2.msra.mxu0 0.0
        %1319 = vmatprep.subr.mxu0 0.0
        %1320 = vmatpush2.msra.mxu0 0.0
        %1321 = vmatprep.subr.mxu0 0.0
        %1322 = vmatpush2.msra.mxu0 0.0
        %1323 = vmatprep.subr.mxu0 0.0
        %1324 = vmatpush2.msra.mxu0 0.0
        %1325 = vmatprep.subr.mxu0 0.0
        %1326 = vmatpush2.msra.mxu0 0.0
        %1327 = vmatprep.mubr.f32.mxu0 0.0
        %1328 = vmatmul.mubr.f32.gmra.mxu0 %v1261
        %v1329 = vpop.f32.mrf.mxu0
        %v1330 = vadd.f32 0.0, %v1329
        %v1331 = vpop.f32.mrf.mxu0
        %1332 = vdwg.mxu0
        %1334 = vrot.lane.b32.xlu0 %v1330, 24
        %v1335 = vpop.permute.xlu0 %1334
        %vm1337 = vcmask 261312
        %1338 = vst.msk [vmem:[#allocation3] sm:$0xff] %vm1337, %v1335
        %v1339 = vld [vmem:[#allocation3] sm:$0xff]
        %v1340 = vld [vmem:[#allocation12] sm:$0xff]
        %v1341 = vld [vmem:[#allocation12 + $0x8] sm:$0xff]
        %v1342 = vld [vmem:[#allocation12 + $0x10] sm:$0xff]
        %v1343 = vld [vmem:[#allocation12 + $0x18] sm:$0xff]
        %v1344 = vld [vmem:[%s7] sm:$0x1]
        %v1346 = vlaneseq
        %v1347 = vshrl.u32 %v1346, 7
        %v1348 = vsub.s32 0, %v1347
        %v1349 = vrot.slane %v1344, %v1348
        %v1352 = vsel %vm576, %v1339, 0
        %1354 = vmatprep.subr.mxu0 0.0
        %1355 = vmatpush1.msra.mxu0 0.0
        %1356 = vmatprep.subr.mxu0 0.0
        %1357 = vmatpush1.msra.mxu0 0.0
        %1358 = vmatprep.subr.mxu0 0.0
        %1359 = vmatpush1.msra.mxu0 0.0
        %1360 = vmatprep.subr.mxu0 0.0
        %1361 = vmatpush1.msra.mxu0 0.0
        %1362 = vmatprep.subr.mxu0 0.0
        %1363 = vmatpush1.msra.mxu0 0.0
        %1364 = vmatprep.subr.mxu0 0.0
        %1365 = vmatpush1.msra.mxu0 0.0
        %1366 = vmatprep.subr.mxu0 0.0
        %1367 = vmatpush1.msra.mxu0 0.0
        %1368 = vmatprep.subr.mxu0 0.0
        %1369 = vmatpush1.msra.mxu0 0.0
        %1370 = vmatprep.subr.mxu0 0.0
        %1371 = vmatpush1.msra.mxu0 0.0
        %1372 = vmatprep.subr.mxu0 0.0
        %1373 = vmatpush1.msra.mxu0 0.0
        %1374 = vmatprep.subr.mxu0 0.0
        %1375 = vmatpush1.msra.mxu0 0.0
        %1376 = vmatprep.subr.mxu0 0.0
        %1377 = vmatpush1.msra.mxu0 0.0
        %1378 = vmatprep.subr.mxu0 0.0
        %1379 = vmatpush1.msra.mxu0 %v1343
        %1380 = vmatprep.subr.mxu0 0.0
        %1381 = vmatpush1.msra.mxu0 %v1342
        %1382 = vmatprep.subr.mxu0 0.0
        %1383 = vmatpush1.msra.mxu0 %v1341
        %1384 = vmatprep.subr.mxu0 0.0
        %1385 = vmatpush1.msra.mxu0 %v1340
        %1386 = vmatprep.subr.mxu0 0.0
        %1387 = vmatpush2.msra.mxu0 0.0
        %1388 = vmatprep.subr.mxu0 0.0
        %1389 = vmatpush2.msra.mxu0 0.0
        %1390 = vmatprep.subr.mxu0 0.0
        %1391 = vmatpush2.msra.mxu0 0.0
        %1392 = vmatprep.subr.mxu0 0.0
        %1393 = vmatpush2.msra.mxu0 0.0
        %1394 = vmatprep.subr.mxu0 0.0
        %1395 = vmatpush2.msra.mxu0 0.0
        %1396 = vmatprep.subr.mxu0 0.0
        %1397 = vmatpush2.msra.mxu0 0.0
        %1398 = vmatprep.subr.mxu0 0.0
        %1399 = vmatpush2.msra.mxu0 0.0
        %1400 = vmatprep.subr.mxu0 0.0
        %1401 = vmatpush2.msra.mxu0 0.0
        %1402 = vmatprep.subr.mxu0 0.0
        %1403 = vmatpush2.msra.mxu0 0.0
        %1404 = vmatprep.subr.mxu0 0.0
        %1405 = vmatpush2.msra.mxu0 0.0
        %1406 = vmatprep.subr.mxu0 0.0
        %1407 = vmatpush2.msra.mxu0 0.0
        %1408 = vmatprep.subr.mxu0 0.0
        %1409 = vmatpush2.msra.mxu0 0.0
        %1410 = vmatprep.subr.mxu0 0.0
        %1411 = vmatpush2.msra.mxu0 0.0
        %1412 = vmatprep.subr.mxu0 0.0
        %1413 = vmatpush2.msra.mxu0 0.0
        %1414 = vmatprep.subr.mxu0 0.0
        %1415 = vmatpush2.msra.mxu0 0.0
        %1416 = vmatprep.subr.mxu0 0.0
        %1417 = vmatpush2.msra.mxu0 0.0
        %1418 = vmatprep.mubr.f32.mxu0 0.0
        %1419 = vmatmul.mubr.f32.gmra.mxu0 %v1352
        %v1420 = vpop.f32.mrf.mxu0
        %v1421 = vadd.f32 %v1349, %v1420
        %v1422 = vpop.f32.mrf.mxu0
        %1423 = vdwg.mxu0
        %v1424 = vadd.f32 %v472, %v1421
        %v1425 = vsel %vm576, %v1424, 0.0
        %1426 = vadd.xlane.f32.xlu0 %v1425
        %v1427 = vpop.xlane.xlu0 %1426
        %v1428 = vrcp.pop 32.0
        %v1429 = vmul.f32 %v1427, %v1428
        %v1430 = vsub.f32 %v1424, %v1429
        %v1431 = vmul.f32 %v1430, %v1430
        %v1432 = vsel %vm576, %v1431, 0.0
        %1433 = vadd.xlane.f32.xlu0 %v1432
        %v1434 = vpop.xlane.xlu0 %1433
        %v1435 = vmul.f32 %v1434, %v1428
        %v1436 = vadd.f32 %v1435, 1e-05
        %v1437 = vrsqrt.pop %v1436
        %v1438 = vmul.f32 %v1430, %v1437
        %v1439 = vld [vmem:[%s8] sm:$0x1]
        %v1441 = vlaneseq
        %v1442 = vshrl.u32 %v1441, 7
        %v1443 = vsub.s32 0, %v1442
        %v1444 = vrot.slane %v1439, %v1443
        %v1446 = vmul.f32 %v1438, %v1444
        %v1447 = vld [vmem:[%s9] sm:$0x1]
        %v1449 = vlaneseq
        %v1450 = vshrl.u32 %v1449, 7
        %v1451 = vsub.s32 0, %v1450
        %v1452 = vrot.slane %v1447, %v1451
        %v1454 = vadd.f32 %v1446, %v1452
        %1455 = vst.msk [vmem:[%s471] sm:$0xff] %vm576, %v1454
        %s1456 = sand.u32 %s275, 1
        %s1457 = scalar_lea.sflag [#allocation6], %s1456
        %s1458 = sand.u32 %s275, 1
        %s1459 = smul.addr %s1458, 8
        %s1460 = scalar_lea.vmem [#allocation13], %s1459
        // Predicated region
        $region85: #{tpu_custom_call.1} parent=59 // pred_check
          %p1461 = pneg %p285
        $region86: #{tpu_custom_call.1} parent=59 // pred_check_branch
          %1463 = sbr.rel (%p1461) target = $region88
        $region87: #{tpu_custom_call.1} parent=59 // pred_region
          %s1465 = ssub.s32 128, 128
          %1466 = vsyncadd %s1457, %s1465
          %s1467 = sadd.s32 %s36, %s35
          %s1468 = smul.addr %s1467, 128
          %s1469 = scalar_lea.hbm %s10, %s1468
          %s1471 = sshll.u32 %s1460, 4
          %s1472 = int_to_ptr.vmem [resolvable:$true] %s1471
          %1474 = dma.vmem_to_hbm [thread:$0]  %s1472, 128, %s1469, %s1457
        $region88: #{tpu_custom_call.1} parent=59 // pred_fallthru
          _
      $region60: #{tpu_custom_call.1} parent=5 // pred_fallthru
        _
      %p1475 = scmp.le.s32.totalorder 2, %s26
      // Predicated region
      $region89: #{tpu_custom_call.1} parent=5 // pred_check
        %p1476 = pneg %p1475
      $region90: #{tpu_custom_call.1} parent=5 // pred_check_branch
        %1478 = sbr.rel (%p1476) target = $region92
      $region91: #{tpu_custom_call.1} parent=5 // pred_region
        %s1479 = ssub.s32 %s26, 2
        // Predicated region
        $region93: #{tpu_custom_call.1} parent=91 // pred_check
          %p1480 = pneg %p291
        $region94: #{tpu_custom_call.1} parent=91 // pred_check_branch
          %1482 = sbr.rel (%p1480) target = $region96
        $region95: #{tpu_custom_call.1} parent=91 // pred_region
          %s1483 = sand.u32 %s276, 1
          %s1484 = scalar_lea.sflag [#allocation6], %s1483
          %s1485 = sand.u32 %s276, 1
          %s1486 = smul.addr %s1485, 8
          %s1487 = scalar_lea.vmem [#allocation13], %s1486
          %1488 = dma.done %s1484, 128
        $region96: #{tpu_custom_call.1} parent=91 // pred_fallthru
          _
      $region92: #{tpu_custom_call.1} parent=5 // pred_fallthru
        _
    $region6: #{tpu_custom_call.1} parent=1 // loop_footer
      %s30 = sadd.s32 1, %s26
    $region7: #{tpu_custom_call.1} parent=1 // loop_footer_branch
      %25 = sbr.rel target = $region3
    $region8: #{tpu_custom_call.1} parent=1 // loop_exit
      _
    %1489 = vsyncpa [#allocation5], 1
    %s1490 = scalar_lea.sflag [#allocation5], 1
    %1491 = vsyncpa %s1490, 1
    %1492 = vsyncpa [#allocation8], 1
    %s1493 = scalar_lea.sflag [#allocation8], 1
    %1494 = vsyncpa %s1493, 1
    %1495 = vsyncpa [#allocation11], 1
    %1496 = vsyncpa [#allocation6], 1
    %s1497 = scalar_lea.sflag [#allocation6], 1
    %1498 = vsyncpa %s1497, 1

</llo_original>
